<compile_context>
chip_gen: v7x
topology: tpu7x:2x2x1
jax: 0.10.0
libtpu: 0.0.40
codegen_flags: <defaults>
</compile_context>

<pallas_src>
import functools
import math

import jax
import jax.numpy as jnp
from jax.experimental import pallas as pl
from jax.experimental.pallas import tpu as pltpu


# ----------------------------------------------------------------------------
# Activation helpers (shared by kernel and reference)
# ----------------------------------------------------------------------------
def _apply_act(y, name, coef_x, coef_tanh):
    if name == "relu":
        return jnp.maximum(y, 0.0)
    if name == "lrelu":
        return jnp.where(y >= 0.0, y, 0.01 * y)  # nn.LeakyReLU default slope
    if name == "sigmoid":
        return jax.nn.sigmoid(y)
    if name == "xtanh":
        return coef_tanh * jnp.tanh(y) + coef_x * y
    if name == "none":
        return y
    raise ValueError(f"unknown activation: {name}")


def parse_activation(spec):
    parts = spec.split("_")
    name = parts[0].lower()
    if name == "xtanh":
        coef_x = 1.0 if len(parts) == 1 else float(parts[1])
        coef_tanh = 1.0 if len(parts) < 3 else float(parts[2])
        return ("xtanh", coef_x, coef_tanh)
    if name in ("relu", "lrelu", "sigmoid", "none"):
        return (name, 1.0, 1.0)
    raise ValueError(f"bad activation spec: {spec}")


# ----------------------------------------------------------------------------
# Fused Pallas kernel: whole MLP (chained matmuls + activations) in one body
# ----------------------------------------------------------------------------
def _fused_mlp_kernel(*refs, acts):
    # refs = (x_ref, w1, b1, w2, b2, ..., wL, bL, o_ref)
    x_ref = refs[0]
    o_ref = refs[-1]
    wb = refs[1:-1]
    n_layers = len(acts)

    h = x_ref[...]                                   # bf16, lane-packed batch rows
    for li, (name, cx, ct) in enumerate(acts):
        w = wb[2 * li][...]                          # bf16 (block-diag packed) weight
        b = wb[2 * li + 1][...]                      # f32 bias, (1, n) broadcast
        y = jnp.dot(h, w, preferred_element_type=jnp.float32) + b
        y = _apply_act(y, name, cx, ct)              # elementwise math in f32
        h = y.astype(jnp.bfloat16) if li + 1 < n_layers else y
    o_ref[...] = h.astype(o_ref.dtype)


# ----------------------------------------------------------------------------
# Wrapper: lane packing, batch tiling, pallas_call
# ----------------------------------------------------------------------------
def _round_up(n, m):
    return ((n + m - 1) // m) * m


def _cdiv(a, b):
    return (a + b - 1) // b


_MIN_TILE_P = 16                      # packed-row granularity (bf16 native tile)
_CAP_TILE_P = 512                     # packed rows / grid step (=8192 orig rows)
_MAX_PACKED_W_ELEMS = 4 * 1024 * 1024  # packing fallback threshold (~8 MiB bf16)


@functools.partial(jax.jit, static_argnums=(0,))
def _fused_mlp_call(acts, x, *wb):
    """acts: static tuple of (name, coef_x, coef_tanh); wb: (w1, b1, w2, b2, ...)."""
    B, in_dim = x.shape
    out_dim = wb[-2].shape[1]
    n_layers = len(acts)

    # Lane packing factor: fold `pack` batch rows into the lane axis so the
    # output width (pack*out_dim) is a multiple of 128 -> unmasked stores.
    pack = 128 // math.gcd(128, out_dim)
    if pack > 1:
        w_elems = sum(wb[2 * i].size for i in range(n_layers)) * pack * pack
        if w_elems > _MAX_PACKED_W_ELEMS:
            pack = 1  # TODO(synk): fallback path is lane-sparse (masked stores)

    # Block-diagonal packed weights (bf16 for the MXU), tiled biases (f32).
    w_flat = []
    for i in range(n_layers):
        w = wb[2 * i].astype(jnp.bfloat16)
        b = wb[2 * i + 1].astype(jnp.float32).reshape(-1)
        if pack > 1:
            w = jnp.kron(jnp.eye(pack, dtype=w.dtype), w)
            b = jnp.tile(b, pack)
        w_flat += [w, b.reshape(1, -1)]

    # Batch tiling on packed rows: balanced tiles (avoid pad-to-tile blowup),
    # >= 2 grid steps when possible so v7x can shard across both TensorCores.
    P = _cdiv(B, pack)
    num_tiles = _cdiv(P, _CAP_TILE_P)
    if P >= 2 * _MIN_TILE_P:
        num_tiles = max(num_tiles, 2)
    tile_p = _round_up(_cdiv(P, num_tiles), _MIN_TILE_P)
    num_tiles = _cdiv(P, tile_p)
    p_pad = num_tiles * tile_p
    b_pad = p_pad * pack

    xp = x.astype(jnp.bfloat16)
    if b_pad != B:
        xp = jnp.pad(xp, ((0, b_pad - B), (0, 0)))
    xp = xp.reshape(p_pad, pack * in_dim)        # free: contiguous row-major

    in_specs = [pl.BlockSpec((tile_p, pack * in_dim), lambda i: (i, 0))]
    for arr in w_flat:
        # Constant index_map -> weights/biases stay VMEM-resident across steps.
        in_specs.append(pl.BlockSpec(arr.shape, lambda i: (0, 0)))
    out_specs = pl.BlockSpec((tile_p, pack * out_dim), lambda i: (i, 0))

    out = pl.pallas_call(
        functools.partial(_fused_mlp_kernel, acts=acts),
        out_shape=jax.ShapeDtypeStruct((p_pad, pack * out_dim), jnp.float32),
        grid=(num_tiles,),
        in_specs=in_specs,
        out_specs=out_specs,
        compiler_params=pltpu.CompilerParams(
            dimension_semantics=("parallel",),     # batch axis -> both TCs on v7x
            vmem_limit_bytes=32 * 1024 * 1024,     # headroom over v5e's 16 MiB default
        ),
    )(xp, *w_flat)

    return out.reshape(b_pad, out_dim)[:B]         # free reshape, drop padding


# ----------------------------------------------------------------------------
# MLP glue: parameter init, forward, pure-JAX reference
# ----------------------------------------------------------------------------
def init_mlp_params(key, input_dim, hidden_dims, output_dim):
    dims_in = [input_dim] + hidden_dims
    dims_out = hidden_dims + [output_dim]
    params = []
    for d_in, d_out in zip(dims_in, dims_out):
        key, kw, kb = jax.random.split(key, 3)
        bound = 1.0 / jnp.sqrt(d_in)  # nn.Linear default init
        w = jax.random.uniform(kw, (d_in, d_out), jnp.float32, -bound, bound)
        b = jax.random.uniform(kb, (d_out,), jnp.float32, -bound, bound)
        params.append((w, b))
    return params


def mlp_forward(x, params, activations):
    """Whole MLP in a single fused (jitted) Pallas kernel call."""
    acts = tuple(parse_activation(a) for a in activations)
    flat = []
    for w, b in params:
        flat += [w, b]
    return _fused_mlp_call(acts, x, *flat)


def mlp_reference(x, params, activations, matmul_dtype=jnp.float32):
    """Pure-JAX reference; matmul_dtype=bf16 mirrors the kernel's cast exactly."""
    h = x
    for (w, b), spec in zip(params, activations):
        name, cx, ct = parse_activation(spec)
        y = jnp.dot(h.astype(matmul_dtype), w.astype(matmul_dtype),
                    preferred_element_type=jnp.float32) + b.astype(jnp.float32)
        h = _apply_act(y, name, cx, ct)
    return h


if __name__ == "__main__":
    input_dim, hidden_dims, output_dim = 16, [32, 64], 8
    activations = ["relu", "xtanh_1.0_0.5", "none"]
    batch = 64

    key = jax.random.PRNGKey(0)
    key, kx = jax.random.split(key)
    x = jax.random.normal(kx, (batch, input_dim), jnp.float32)
    params = init_mlp_params(key, input_dim, hidden_dims, output_dim)

    out = jax.block_until_ready(mlp_forward(x, params, activations))
    assert out.shape == (batch, output_dim)

    # Primary check: against a reference using the same bf16 matmul inputs.
    ref_bf16 = mlp_reference(x, params, activations, matmul_dtype=jnp.bfloat16)
    assert jnp.allclose(out, ref_bf16, atol=5e-3, rtol=5e-3), "mismatch vs bf16 reference"

    # Sanity check: against the full-f32 reference with bf16-appropriate tolerance.
    ref_f32 = mlp_reference(x, params, activations, matmul_dtype=jnp.float32)
    assert jnp.allclose(out, ref_f32, atol=1e-1, rtol=5e-2), "mismatch vs f32 reference"

    print("KERNEL_OK")
</pallas_src>

<mosaic_0001>
module attributes {stable_mosaic.version = 11 : i64} {
  func.func @_fused_mlp_kernel(%arg0: i32, %arg1: memref<16x256xbf16, #tpu.memory_space<vmem>>, %arg2: memref<256x512xbf16, #tpu.memory_space<vmem>>, %arg3: memref<1x512xf32, #tpu.memory_space<vmem>>, %arg4: memref<512x1024xbf16, #tpu.memory_space<vmem>>, %arg5: memref<1x1024xf32, #tpu.memory_space<vmem>>, %arg6: memref<1024x128xbf16, #tpu.memory_space<vmem>>, %arg7: memref<1x128xf32, #tpu.memory_space<vmem>>, %arg8: memref<16x128xf32, #tpu.memory_space<vmem>>) attributes {dimension_semantics = [#tpu.dimension_semantics<parallel>], iteration_bounds = array<i64: 1>, scalar_prefetch = 0 : i64, scratch_operands = 0 : i64, tpu.core_type = #tpu.core_type<tc>, window_params = [{transform_indices = @transform_0, window_bounds = array<i64: 16, 256>}, {pipeline_mode = #tpu.pipeline_mode<synchronous>, transform_indices = @transform_1, window_bounds = array<i64: 256, 512>}, {pipeline_mode = #tpu.pipeline_mode<synchronous>, transform_indices = @transform_2, window_bounds = array<i64: 1, 512>}, {pipeline_mode = #tpu.pipeline_mode<synchronous>, transform_indices = @transform_3, window_bounds = array<i64: 512, 1024>}, {pipeline_mode = #tpu.pipeline_mode<synchronous>, transform_indices = @transform_4, window_bounds = array<i64: 1, 1024>}, {pipeline_mode = #tpu.pipeline_mode<synchronous>, transform_indices = @transform_5, window_bounds = array<i64: 1024, 128>}, {pipeline_mode = #tpu.pipeline_mode<synchronous>, transform_indices = @transform_6, window_bounds = array<i64: 1, 128>}, {transform_indices = @transform_7, window_bounds = array<i64: 16, 128>}]} {
    %c0 = arith.constant 0 : index
    %c0_0 = arith.constant 0 : index
    %0 = vector.load %arg1[%c0, %c0_0] : memref<16x256xbf16, #tpu.memory_space<vmem>>, vector<16x256xbf16>
    %c0_1 = arith.constant 0 : index
    %c0_2 = arith.constant 0 : index
    %1 = vector.load %arg2[%c0_1, %c0_2] : memref<256x512xbf16, #tpu.memory_space<vmem>>, vector<256x512xbf16>
    %c0_3 = arith.constant 0 : index
    %c0_4 = arith.constant 0 : index
    %2 = vector.load %arg3[%c0_3, %c0_4] : memref<1x512xf32, #tpu.memory_space<vmem>>, vector<1x512xf32>
    %cst = arith.constant dense<0.000000e+00> : vector<16x512xf32>
    %3 = tpu.matmul %0, %1, %cst {dimension_numbers = #tpu.dot_dimension_numbers<[1], [0], [0], [1], [0, 0, 1, 1], [], []>} : vector<16x256xbf16>, vector<256x512xbf16>, vector<16x512xf32> -> vector<16x512xf32>
    %4 = vector.broadcast %2 : vector<1x512xf32> to vector<16x512xf32>
    %5 = arith.addf %3, %4 : vector<16x512xf32>
    %cst_5 = arith.constant 0.000000e+00 : f32
    %6 = vector.broadcast %cst_5 : f32 to vector<16x512xf32>
    %7 = arith.maximumf %5, %6 : vector<16x512xf32>
    %8 = arith.truncf %7 : vector<16x512xf32> to vector<16x512xbf16>
    %c0_6 = arith.constant 0 : index
    %c0_7 = arith.constant 0 : index
    %9 = vector.load %arg4[%c0_6, %c0_7] : memref<512x1024xbf16, #tpu.memory_space<vmem>>, vector<512x1024xbf16>
    %c0_8 = arith.constant 0 : index
    %c0_9 = arith.constant 0 : index
    %10 = vector.load %arg5[%c0_8, %c0_9] : memref<1x1024xf32, #tpu.memory_space<vmem>>, vector<1x1024xf32>
    %cst_10 = arith.constant dense<0.000000e+00> : vector<16x1024xf32>
    %11 = tpu.matmul %8, %9, %cst_10 {dimension_numbers = #tpu.dot_dimension_numbers<[1], [0], [0], [1], [0, 0, 1, 1], [], []>} : vector<16x512xbf16>, vector<512x1024xbf16>, vector<16x1024xf32> -> vector<16x1024xf32>
    %12 = vector.broadcast %10 : vector<1x1024xf32> to vector<16x1024xf32>
    %13 = arith.addf %11, %12 : vector<16x1024xf32>
    %14 = math.tanh %13 : vector<16x1024xf32>
    %cst_11 = arith.constant 5.000000e-01 : f32
    %15 = vector.broadcast %cst_11 : f32 to vector<16x1024xf32>
    %16 = arith.mulf %15, %14 : vector<16x1024xf32>
    %cst_12 = arith.constant 1.000000e+00 : f32
    %17 = vector.broadcast %cst_12 : f32 to vector<16x1024xf32>
    %18 = arith.mulf %17, %13 : vector<16x1024xf32>
    %19 = arith.addf %16, %18 : vector<16x1024xf32>
    %20 = arith.truncf %19 : vector<16x1024xf32> to vector<16x1024xbf16>
    %c0_13 = arith.constant 0 : index
    %c0_14 = arith.constant 0 : index
    %21 = vector.load %arg6[%c0_13, %c0_14] : memref<1024x128xbf16, #tpu.memory_space<vmem>>, vector<1024x128xbf16>
    %c0_15 = arith.constant 0 : index
    %c0_16 = arith.constant 0 : index
    %22 = vector.load %arg7[%c0_15, %c0_16] : memref<1x128xf32, #tpu.memory_space<vmem>>, vector<1x128xf32>
    %cst_17 = arith.constant dense<0.000000e+00> : vector<16x128xf32>
    %23 = tpu.matmul %20, %21, %cst_17 {dimension_numbers = #tpu.dot_dimension_numbers<[1], [0], [0], [1], [0, 0, 1, 1], [], []>} : vector<16x1024xbf16>, vector<1024x128xbf16>, vector<16x128xf32> -> vector<16x128xf32>
    %24 = vector.broadcast %22 : vector<1x128xf32> to vector<16x128xf32>
    %25 = arith.addf %23, %24 : vector<16x128xf32>
    %c0_18 = arith.constant 0 : index
    %c0_19 = arith.constant 0 : index
    %26 = vector.load %arg8[%c0_18, %c0_19] : memref<16x128xf32, #tpu.memory_space<vmem>>, vector<16x128xf32>
    tpu.vector_store %arg8[%c0_18, %c0_19], %25 {strides = array<i32>} : memref<16x128xf32, #tpu.memory_space<vmem>>, vector<16x128xf32>,
    return
  }
  func.func @transform_0(%arg0: i32) -> (i32, i32) {
    %c0_i32 = arith.constant 0 : i32
    %c0_i32_0 = arith.constant 0 : i32
    return %arg0, %c0_i32 : i32, i32
  }
  func.func @transform_1(%arg0: i32) -> (i32, i32) {
    %c0_i32 = arith.constant 0 : i32
    %c0_i32_0 = arith.constant 0 : i32
    %c0_i32_1 = arith.constant 0 : i32
    return %c0_i32, %c0_i32_0 : i32, i32
  }
  func.func @transform_2(%arg0: i32) -> (i32, i32) {
    %c0_i32 = arith.constant 0 : i32
    %c0_i32_0 = arith.constant 0 : i32
    %c0_i32_1 = arith.constant 0 : i32
    return %c0_i32, %c0_i32_0 : i32, i32
  }
  func.func @transform_3(%arg0: i32) -> (i32, i32) {
    %c0_i32 = arith.constant 0 : i32
    %c0_i32_0 = arith.constant 0 : i32
    %c0_i32_1 = arith.constant 0 : i32
    return %c0_i32, %c0_i32_0 : i32, i32
  }
  func.func @transform_4(%arg0: i32) -> (i32, i32) {
    %c0_i32 = arith.constant 0 : i32
    %c0_i32_0 = arith.constant 0 : i32
    %c0_i32_1 = arith.constant 0 : i32
    return %c0_i32, %c0_i32_0 : i32, i32
  }
  func.func @transform_5(%arg0: i32) -> (i32, i32) {
    %c0_i32 = arith.constant 0 : i32
    %c0_i32_0 = arith.constant 0 : i32
    %c0_i32_1 = arith.constant 0 : i32
    return %c0_i32, %c0_i32_0 : i32, i32
  }
  func.func @transform_6(%arg0: i32) -> (i32, i32) {
    %c0_i32 = arith.constant 0 : i32
    %c0_i32_0 = arith.constant 0 : i32
    %c0_i32_1 = arith.constant 0 : i32
    return %c0_i32, %c0_i32_0 : i32, i32
  }
  func.func @transform_7(%arg0: i32) -> (i32, i32) {
    %c0_i32 = arith.constant 0 : i32
    %c0_i32_0 = arith.constant 0 : i32
    return %arg0, %c0_i32 : i32, i32
  }
}

</mosaic_0001>

<llo_original>
// kernel: tile.23
$region0: #{tile.23}
  #allocation0 [shape = 's32[1]{0}', space=sflag, size = 0x4, scoped, tag = 'scoped memory for tile.23']
  %s0 = inlined_call_operand.vmem [shape: f32[64], index: 0, kind: input, shape index: {}]
  %s1 = inlined_call_operand.vmem [shape: f32[16,64], index: 1, kind: output, shape index: {}]
  // Predicated region
  $region2: #{tile.23} parent=0 // pred_check
    _
  $region3: #{tile.23} parent=0 // pred_check_branch
    %3 = sbr.rel (0) target = $region5
  $region4: #{tile.23} parent=0 // pred_region
    _
  $region5: #{tile.23} parent=0 // pred_fallthru
    _
  %v4 = vld [vmem:[%s0] ss:$0 sm:$0xff]
  %5 = vst [vmem:[%s1] sm:$0xff] %v4
  %s6 = scalar_lea.vmem %s1, 8
  %7 = vst [vmem:[%s6] sm:$0xff] %v4

// kernel: tile.24
$region0: #{tile.24}
  %s0 = inlined_call_operand.vmem [shape: f32[16,64], index: 0, kind: input, shape index: {}]
  %s1 = inlined_call_operand.vmem [shape: f32[1,1024], index: 1, kind: output, shape index: {}]
  $region1: #{tile.24} parent=0
    #allocation0 [shape = 'u8[32768]{0}', space=vmem, size = 0x8000, scoped, tag = 'scoped mem for output reshape']
    %v2 = vld [vmem:[%s0] ss:$2 sm:$0xff]
    %vm3 = vcmask 523264
    %4 = vst.msk [vmem:[#allocation0] ss:$8 sm:$0xf] %vm3, %v2
    %5 = vst.msk [vmem:[#allocation0] ss:$8 sm:$0xf0] %vm3, %v2
    %s6 = scalar_lea.vmem %s0, 1
    %v7 = vld [vmem:[%s6] ss:$2 sm:$0xff]
    %8 = vrot.lane.b32.xlu0 %v7, 64
    %v9 = vpop.permute.xlu0 %8
    %vm10 = vcmask 1048064
    %11 = vst.msk [vmem:[#allocation0] ss:$8 sm:$0xf] %vm10, %v9
    %12 = vst.msk [vmem:[#allocation0] ss:$8 sm:$0xf0] %vm10, %v9
    %s14 = sshllo.u32 0, 1
    %v16 = vld [vmem:[#allocation0] sm:%s14]
    %s17 = sshllo.u32 0, 1
    %18 = vst [vmem:[%s1] sm:%s17] %v16
    %s19 = scalar_lea.vmem [#allocation0], 8
    %v20 = vld [vmem:[%s19] sm:%s14]
    %s21 = sshllo.u32 0, 1
    %s22 = scalar_lea.vmem %s1, 1
    %23 = vst [vmem:[%s22] sm:%s21] %v20
    %s24 = scalar_lea.vmem [#allocation0], 16
    %v25 = vld [vmem:[%s24] sm:%s14]
    %s26 = sshllo.u32 0, 1
    %s27 = smul.addr 1, 2
    %s28 = scalar_lea.vmem %s1, %s27
    %29 = vst [vmem:[%s28] sm:%s26] %v25
    %s30 = scalar_lea.vmem [#allocation0], 24
    %v31 = vld [vmem:[%s30] sm:%s14]
    %s32 = sshllo.u32 0, 1
    %s33 = smul.addr 1, 3
    %s34 = scalar_lea.vmem %s1, %s33
    %35 = vst [vmem:[%s34] sm:%s32] %v31
    %s36 = scalar_lea.vmem [#allocation0], 32
    %v37 = vld [vmem:[%s36] sm:%s14]
    %s38 = sshllo.u32 0, 1
    %s39 = smul.addr 1, 4
    %s40 = scalar_lea.vmem %s1, %s39
    %41 = vst [vmem:[%s40] sm:%s38] %v37
    %s42 = scalar_lea.vmem [#allocation0], 40
    %v43 = vld [vmem:[%s42] sm:%s14]
    %s44 = sshllo.u32 0, 1
    %s45 = smul.addr 1, 5
    %s46 = scalar_lea.vmem %s1, %s45
    %47 = vst [vmem:[%s46] sm:%s44] %v43
    %s48 = scalar_lea.vmem [#allocation0], 48
    %v49 = vld [vmem:[%s48] sm:%s14]
    %s50 = sshllo.u32 0, 1
    %s51 = smul.addr 1, 6
    %s52 = scalar_lea.vmem %s1, %s51
    %53 = vst [vmem:[%s52] sm:%s50] %v49
    %s54 = scalar_lea.vmem [#allocation0], 56
    %v55 = vld [vmem:[%s54] sm:%s14]
    %s56 = sshllo.u32 0, 1
    %s57 = smul.addr 1, 7
    %s58 = scalar_lea.vmem %s1, %s57
    %59 = vst [vmem:[%s58] sm:%s56] %v55

// kernel: tile.18
$region0: #{tile.18}
  #allocation0 [shape = 's32[1]{0}', space=sflag, size = 0x4, scoped, tag = 'scoped memory for tile.18']
  %s0 = inlined_call_operand.vmem [shape: f32[32], index: 0, kind: input, shape index: {}]
  %s1 = inlined_call_operand.vmem [shape: f32[16,32], index: 1, kind: output, shape index: {}]
  // Predicated region
  $region2: #{tile.18} parent=0 // pred_check
    _
  $region3: #{tile.18} parent=0 // pred_check_branch
    %3 = sbr.rel (0) target = $region5
  $region4: #{tile.18} parent=0 // pred_region
    _
  $region5: #{tile.18} parent=0 // pred_fallthru
    _
  %v4 = vld [vmem:[%s0] ss:$0 sm:$0xff]
  %5 = vst [vmem:[%s1] sm:$0xff] %v4
  %s6 = scalar_lea.vmem %s1, 8
  %7 = vst [vmem:[%s6] sm:$0xff] %v4

// kernel: tile.19
$region0: #{tile.19}
  %s0 = inlined_call_operand.vmem [shape: f32[16,32], index: 0, kind: input, shape index: {}]
  %s1 = inlined_call_operand.vmem [shape: f32[1,512], index: 1, kind: output, shape index: {}]
  $region1: #{tile.19} parent=0
    #allocation0 [shape = 'u8[16384]{0}', space=vmem, size = 0x4000, scoped, tag = 'scoped mem for output reshape']
    %v2 = vld [vmem:[%s0] ss:$4 sm:$0xf]
    %vm3 = vcmask 261120
    %4 = vst.msk [vmem:[#allocation0] ss:$8 sm:$0xf] %vm3, %v2
    %s5 = scalar_lea.vmem %s0, 3
    %v6 = vld [vmem:[%s5] ss:$4 sm:$0xf]
    %7 = vrot.lane.b32.xlu0 %v6, 96
    %v8 = vpop.permute.xlu0 %7
    %vm9 = vcmask 1048320
    %10 = vst.msk [vmem:[#allocation0] ss:$8 sm:$0xf] %vm9, %v8
    %s11 = scalar_lea.vmem %s0, 2
    %v12 = vld [vmem:[%s11] ss:$4 sm:$0xf]
    %13 = vrot.lane.b32.xlu0 %v12, 64
    %v14 = vpop.permute.xlu0 %13
    %vm15 = vcmask 785920
    %16 = vst.msk [vmem:[#allocation0] ss:$8 sm:$0xf] %vm15, %v14
    %s17 = scalar_lea.vmem %s0, 1
    %v18 = vld [vmem:[%s17] ss:$4 sm:$0xf]
    %19 = vrot.lane.b32.xlu0 %v18, 32
    %v20 = vpop.permute.xlu0 %19
    %vm21 = vcmask 523520
    %22 = vst.msk [vmem:[#allocation0] ss:$8 sm:$0xf] %vm21, %v20
    %s24 = sshllo.u32 0, 1
    %v26 = vld [vmem:[#allocation0] sm:%s24]
    %s27 = sshllo.u32 0, 1
    %28 = vst [vmem:[%s1] sm:%s27] %v26
    %s29 = scalar_lea.vmem [#allocation0], 8
    %v30 = vld [vmem:[%s29] sm:%s24]
    %s31 = sshllo.u32 0, 1
    %s32 = scalar_lea.vmem %s1, 1
    %33 = vst [vmem:[%s32] sm:%s31] %v30
    %s34 = scalar_lea.vmem [#allocation0], 16
    %v35 = vld [vmem:[%s34] sm:%s24]
    %s36 = sshllo.u32 0, 1
    %s37 = smul.addr 1, 2
    %s38 = scalar_lea.vmem %s1, %s37
    %39 = vst [vmem:[%s38] sm:%s36] %v35
    %s40 = scalar_lea.vmem [#allocation0], 24
    %v41 = vld [vmem:[%s40] sm:%s24]
    %s42 = sshllo.u32 0, 1
    %s43 = smul.addr 1, 3
    %s44 = scalar_lea.vmem %s1, %s43
    %45 = vst [vmem:[%s44] sm:%s42] %v41

// kernel: tile.28
$region0: #{tile.28}
  #allocation0 [shape = 's32[1]{0}', space=sflag, size = 0x4, scoped, tag = 'scoped memory for tile.28']
  %s0 = inlined_call_operand.vmem [shape: f32[8], index: 0, kind: input, shape index: {}]
  %s1 = inlined_call_operand.vmem [shape: f32[16,8], index: 1, kind: output, shape index: {}]
  // Predicated region
  $region2: #{tile.28} parent=0 // pred_check
    _
  $region3: #{tile.28} parent=0 // pred_check_branch
    %3 = sbr.rel (0) target = $region5
  $region4: #{tile.28} parent=0 // pred_region
    _
  $region5: #{tile.28} parent=0 // pred_fallthru
    _
  %v4 = vld [vmem:[%s0] ss:$0 sm:$0xff]
  %5 = vst [vmem:[%s1] sm:$0xff] %v4
  %s6 = scalar_lea.vmem %s1, 8
  %7 = vst [vmem:[%s6] sm:$0xff] %v4

// kernel: tile.29
$region0: #{tile.29}
  %s0 = inlined_call_operand.vmem [shape: f32[16,8], index: 0, kind: input, shape index: {}]
  %s1 = inlined_call_operand.vmem [shape: f32[1,128], index: 1, kind: output, shape index: {}]
  $region1: #{tile.29} parent=0
    #allocation0 [shape = 'u8[4096]{0}', space=vmem, size = 0x1000, scoped, tag = 'scoped mem for output reshape']
    %v2 = vld [vmem:[%s0] sm:$0x1]
    %vm3 = vcmask 64512
    %4 = vst.msk [vmem:[#allocation0] sm:$0x1] %vm3, %v2
    %s5 = scalar_lea.vmem %s0, 15
    %v6 = vld [vmem:[%s5] sm:$0x1]
    %7 = vrot.lane.b32.xlu0 %v6, 120
    %v8 = vpop.permute.xlu0 %7
    %vm9 = vcmask 1048512
    %10 = vst.msk [vmem:[#allocation0] sm:$0x1] %vm9, %v8
    %s11 = scalar_lea.vmem %s0, 14
    %v12 = vld [vmem:[%s11] sm:$0x1]
    %13 = vrot.lane.b32.xlu0 %v12, 112
    %v14 = vpop.permute.xlu0 %13
    %vm15 = vcmask 982912
    %16 = vst.msk [vmem:[#allocation0] sm:$0x1] %vm15, %v14
    %s17 = scalar_lea.vmem %s0, 13
    %v18 = vld [vmem:[%s17] sm:$0x1]
    %19 = vrot.lane.b32.xlu0 %v18, 104
    %v20 = vpop.permute.xlu0 %19
    %vm21 = vcmask 917312
    %22 = vst.msk [vmem:[#allocation0] sm:$0x1] %vm21, %v20
    %s23 = scalar_lea.vmem %s0, 12
    %v24 = vld [vmem:[%s23] sm:$0x1]
    %25 = vrot.lane.b32.xlu0 %v24, 96
    %v26 = vpop.permute.xlu0 %25
    %vm27 = vcmask 851712
    %28 = vst.msk [vmem:[#allocation0] sm:$0x1] %vm27, %v26
    %s29 = scalar_lea.vmem %s0, 11
    %v30 = vld [vmem:[%s29] sm:$0x1]
    %31 = vrot.lane.b32.xlu0 %v30, 88
    %v32 = vpop.permute.xlu0 %31
    %vm33 = vcmask 786112
    %34 = vst.msk [vmem:[#allocation0] sm:$0x1] %vm33, %v32
    %s35 = scalar_lea.vmem %s0, 10
    %v36 = vld [vmem:[%s35] sm:$0x1]
    %37 = vrot.lane.b32.xlu0 %v36, 80
    %v38 = vpop.permute.xlu0 %37
    %vm39 = vcmask 720512
    %40 = vst.msk [vmem:[#allocation0] sm:$0x1] %vm39, %v38
    %s41 = scalar_lea.vmem %s0, 9
    %v42 = vld [vmem:[%s41] sm:$0x1]
    %43 = vrot.lane.b32.xlu0 %v42, 72
    %v44 = vpop.permute.xlu0 %43
    %vm45 = vcmask 654912
    %46 = vst.msk [vmem:[#allocation0] sm:$0x1] %vm45, %v44
    %s47 = scalar_lea.vmem %s0, 8
    %v48 = vld [vmem:[%s47] sm:$0x1]
    %49 = vrot.lane.b32.xlu0 %v48, 64
    %v50 = vpop.permute.xlu0 %49
    %vm51 = vcmask 589312
    %52 = vst.msk [vmem:[#allocation0] sm:$0x1] %vm51, %v50
    %s53 = scalar_lea.vmem %s0, 7
    %v54 = vld [vmem:[%s53] sm:$0x1]
    %55 = vrot.lane.b32.xlu0 %v54, 56
    %v56 = vpop.permute.xlu0 %55
    %vm57 = vcmask 523712
    %58 = vst.msk [vmem:[#allocation0] sm:$0x1] %vm57, %v56
    %s59 = scalar_lea.vmem %s0, 6
    %v60 = vld [vmem:[%s59] sm:$0x1]
    %61 = vrot.lane.b32.xlu0 %v60, 48
    %v62 = vpop.permute.xlu0 %61
    %vm63 = vcmask 458112
    %64 = vst.msk [vmem:[#allocation0] sm:$0x1] %vm63, %v62
    %s65 = scalar_lea.vmem %s0, 5
    %v66 = vld [vmem:[%s65] sm:$0x1]
    %67 = vrot.lane.b32.xlu0 %v66, 40
    %v68 = vpop.permute.xlu0 %67
    %vm69 = vcmask 392512
    %70 = vst.msk [vmem:[#allocation0] sm:$0x1] %vm69, %v68
    %s71 = scalar_lea.vmem %s0, 4
    %v72 = vld [vmem:[%s71] sm:$0x1]
    %73 = vrot.lane.b32.xlu0 %v72, 32
    %v74 = vpop.permute.xlu0 %73
    %vm75 = vcmask 326912
    %76 = vst.msk [vmem:[#allocation0] sm:$0x1] %vm75, %v74
    %s77 = scalar_lea.vmem %s0, 3
    %v78 = vld [vmem:[%s77] sm:$0x1]
    %79 = vrot.lane.b32.xlu0 %v78, 24
    %v80 = vpop.permute.xlu0 %79
    %vm81 = vcmask 261312
    %82 = vst.msk [vmem:[#allocation0] sm:$0x1] %vm81, %v80
    %s83 = scalar_lea.vmem %s0, 2
    %v84 = vld [vmem:[%s83] sm:$0x1]
    %85 = vrot.lane.b32.xlu0 %v84, 16
    %v86 = vpop.permute.xlu0 %85
    %vm87 = vcmask 195712
    %88 = vst.msk [vmem:[#allocation0] sm:$0x1] %vm87, %v86
    %s89 = scalar_lea.vmem %s0, 1
    %v90 = vld [vmem:[%s89] sm:$0x1]
    %91 = vrot.lane.b32.xlu0 %v90, 8
    %v92 = vpop.permute.xlu0 %91
    %vm93 = vcmask 130112
    %94 = vst.msk [vmem:[#allocation0] sm:$0x1] %vm93, %v92
    %s96 = sshllo.u32 0, 1
    %v98 = vld [vmem:[#allocation0] sm:%s96]
    %s99 = sshllo.u32 0, 1
    %100 = vst [vmem:[%s1] sm:%s99] %v98

// kernel: _fused_mlp_call.1
$region0: #{_fused_mlp_call.1}
  #allocation0 [shape = 'u32[]', space=smem, size = 0x4, offset = 0x4, fixed_abs, tag = 'smem constant byte address 0x4 - core index']
  #allocation1 [shape = 'u32[144,128]{1,0:T(1,128)}', space=vmem, size = 0x12000, scoped, tag = 'internal scratch']
  %s0 = inlined_call_operand.vmem [shape: bf16[16,256], index: 0, kind: input, shape index: {}]
  %s1 = inlined_call_operand.vmem [shape: bf16[256,512], index: 1, kind: input, shape index: {}]
  %s2 = inlined_call_operand.vmem [shape: f32[1,512], index: 2, kind: input, shape index: {}]
  %s3 = inlined_call_operand.vmem [shape: bf16[512,1024], index: 3, kind: input, shape index: {}]
  %s4 = inlined_call_operand.vmem [shape: f32[1,1024], index: 4, kind: input, shape index: {}]
  %s5 = inlined_call_operand.vmem [shape: bf16[1024,128], index: 5, kind: input, shape index: {}]
  %s6 = inlined_call_operand.vmem [shape: f32[1,128], index: 6, kind: input, shape index: {}]
  %s7 = inlined_call_operand.vmem [shape: f32[16,128], index: 7, kind: output, shape index: {}]
  %s8 = sld [smem:[#allocation0]]
  $region38: #{_fused_mlp_call.1} parent=0
    _
  %s10 = ssub.s32 1, %s8
  %s11 = scalar_select 0, %s10, %s8
  // Predicated region
  $region2: #{_fused_mlp_call.1} parent=0 // pred_check
    _
  $region3: #{_fused_mlp_call.1} parent=0 // pred_check_branch
    %13 = sbr.rel (0) target = $region5
  $region4: #{_fused_mlp_call.1} parent=0 // pred_region
    _
  $region5: #{_fused_mlp_call.1} parent=0 // pred_fallthru
    _
  // Predicated region
  $region6: #{_fused_mlp_call.1} parent=0 // pred_check
    _
  $region7: #{_fused_mlp_call.1} parent=0 // pred_check_branch
    %15 = sbr.rel (0) target = $region9
  $region8: #{_fused_mlp_call.1} parent=0 // pred_region
    _
  $region9: #{_fused_mlp_call.1} parent=0 // pred_fallthru
    _
  // Predicated region
  $region10: #{_fused_mlp_call.1} parent=0 // pred_check
    _
  $region11: #{_fused_mlp_call.1} parent=0 // pred_check_branch
    %17 = sbr.rel (0) target = $region13
  $region12: #{_fused_mlp_call.1} parent=0 // pred_region
    _
  $region13: #{_fused_mlp_call.1} parent=0 // pred_fallthru
    _
  // Predicated region
  $region14: #{_fused_mlp_call.1} parent=0 // pred_check
    _
  $region15: #{_fused_mlp_call.1} parent=0 // pred_check_branch
    %19 = sbr.rel (0) target = $region17
  $region16: #{_fused_mlp_call.1} parent=0 // pred_region
    _
  $region17: #{_fused_mlp_call.1} parent=0 // pred_fallthru
    _
  // Predicated region
  $region18: #{_fused_mlp_call.1} parent=0 // pred_check
    _
  $region19: #{_fused_mlp_call.1} parent=0 // pred_check_branch
    %21 = sbr.rel (0) target = $region21
  $region20: #{_fused_mlp_call.1} parent=0 // pred_region
    _
  $region21: #{_fused_mlp_call.1} parent=0 // pred_fallthru
    _
  // Predicated region
  $region22: #{_fused_mlp_call.1} parent=0 // pred_check
    _
  $region23: #{_fused_mlp_call.1} parent=0 // pred_check_branch
    %23 = sbr.rel (0) target = $region25
  $region24: #{_fused_mlp_call.1} parent=0 // pred_region
    _
  $region25: #{_fused_mlp_call.1} parent=0 // pred_fallthru
    _
  // Predicated region
  $region26: #{_fused_mlp_call.1} parent=0 // pred_check
    _
  $region27: #{_fused_mlp_call.1} parent=0 // pred_check_branch
    %25 = sbr.rel (0) target = $region29
  $region28: #{_fused_mlp_call.1} parent=0 // pred_region
    _
  $region29: #{_fused_mlp_call.1} parent=0 // pred_fallthru
    _
  %v27 = vld [vmem:[%s0] sm:$0xff]
  %v28 = vld [vmem:[%s0 + $0x8] sm:$0xff]
  %v29 = vld [vmem:[%s1] sm:$0xff]
  %v30 = vld [vmem:[%s1 + $0x8] sm:$0xff]
  %v31 = vld [vmem:[%s1 + $0x10] sm:$0xff]
  %v32 = vld [vmem:[%s1 + $0x18] sm:$0xff]
  %v33 = vld [vmem:[%s1 + $0x20] sm:$0xff]
  %v34 = vld [vmem:[%s1 + $0x28] sm:$0xff]
  %v35 = vld [vmem:[%s1 + $0x30] sm:$0xff]
  %v36 = vld [vmem:[%s1 + $0x38] sm:$0xff]
  %v37 = vld [vmem:[%s1 + $0x40] sm:$0xff]
  %v38 = vld [vmem:[%s1 + $0x48] sm:$0xff]
  %v39 = vld [vmem:[%s1 + $0x50] sm:$0xff]
  %v40 = vld [vmem:[%s1 + $0x58] sm:$0xff]
  %v41 = vld [vmem:[%s1 + $0x60] sm:$0xff]
  %v42 = vld [vmem:[%s1 + $0x68] sm:$0xff]
  %v43 = vld [vmem:[%s1 + $0x70] sm:$0xff]
  %v44 = vld [vmem:[%s1 + $0x78] sm:$0xff]
  %v45 = vld [vmem:[%s1 + $0x80] sm:$0xff]
  %v46 = vld [vmem:[%s1 + $0x88] sm:$0xff]
  %v47 = vld [vmem:[%s1 + $0x90] sm:$0xff]
  %v48 = vld [vmem:[%s1 + $0x98] sm:$0xff]
  %v49 = vld [vmem:[%s1 + $0xa0] sm:$0xff]
  %v50 = vld [vmem:[%s1 + $0xa8] sm:$0xff]
  %v51 = vld [vmem:[%s1 + $0xb0] sm:$0xff]
  %v52 = vld [vmem:[%s1 + $0xb8] sm:$0xff]
  %v53 = vld [vmem:[%s1 + $0xc0] sm:$0xff]
  %v54 = vld [vmem:[%s1 + $0xc8] sm:$0xff]
  %v55 = vld [vmem:[%s1 + $0xd0] sm:$0xff]
  %v56 = vld [vmem:[%s1 + $0xd8] sm:$0xff]
  %v57 = vld [vmem:[%s1 + $0xe0] sm:$0xff]
  %v58 = vld [vmem:[%s1 + $0xe8] sm:$0xff]
  %v59 = vld [vmem:[%s1 + $0xf0] sm:$0xff]
  %v60 = vld [vmem:[%s1 + $0xf8] sm:$0xff]
  %v61 = vld [vmem:[%s1 + $0x100] sm:$0xff]
  %v62 = vld [vmem:[%s1 + $0x108] sm:$0xff]
  %v63 = vld [vmem:[%s1 + $0x110] sm:$0xff]
  %v64 = vld [vmem:[%s1 + $0x118] sm:$0xff]
  %v65 = vld [vmem:[%s1 + $0x120] sm:$0xff]
  %v66 = vld [vmem:[%s1 + $0x128] sm:$0xff]
  %v67 = vld [vmem:[%s1 + $0x130] sm:$0xff]
  %v68 = vld [vmem:[%s1 + $0x138] sm:$0xff]
  %v69 = vld [vmem:[%s1 + $0x140] sm:$0xff]
  %v70 = vld [vmem:[%s1 + $0x148] sm:$0xff]
  %v71 = vld [vmem:[%s1 + $0x150] sm:$0xff]
  %v72 = vld [vmem:[%s1 + $0x158] sm:$0xff]
  %v73 = vld [vmem:[%s1 + $0x160] sm:$0xff]
  %v74 = vld [vmem:[%s1 + $0x168] sm:$0xff]
  %v75 = vld [vmem:[%s1 + $0x170] sm:$0xff]
  %v76 = vld [vmem:[%s1 + $0x178] sm:$0xff]
  %v77 = vld [vmem:[%s1 + $0x180] sm:$0xff]
  %v78 = vld [vmem:[%s1 + $0x188] sm:$0xff]
  %v79 = vld [vmem:[%s1 + $0x190] sm:$0xff]
  %v80 = vld [vmem:[%s1 + $0x198] sm:$0xff]
  %v81 = vld [vmem:[%s1 + $0x1a0] sm:$0xff]
  %v82 = vld [vmem:[%s1 + $0x1a8] sm:$0xff]
  %v83 = vld [vmem:[%s1 + $0x1b0] sm:$0xff]
  %v84 = vld [vmem:[%s1 + $0x1b8] sm:$0xff]
  %v85 = vld [vmem:[%s1 + $0x1c0] sm:$0xff]
  %v86 = vld [vmem:[%s1 + $0x1c8] sm:$0xff]
  %v87 = vld [vmem:[%s1 + $0x1d0] sm:$0xff]
  %v88 = vld [vmem:[%s1 + $0x1d8] sm:$0xff]
  %v89 = vld [vmem:[%s1 + $0x1e0] sm:$0xff]
  %v90 = vld [vmem:[%s1 + $0x1e8] sm:$0xff]
  %v91 = vld [vmem:[%s1 + $0x1f0] sm:$0xff]
  %v92 = vld [vmem:[%s1 + $0x1f8] sm:$0xff]
  %v93 = vld [vmem:[%s2] sm:$0xf]
  %v95 = vlaneseq
  %v96 = vshrl.u32 %v95, 7
  %v97 = vsub.s32 0, %v96
  %v98 = vrot.slane %v93, %v97
  %v99 = vlaneseq
  %v100 = vshrl.u32 %v99, 7
  %v101 = vsub.s32 1, %v100
  %v102 = vrot.slane %v93, %v101
  %v103 = vlaneseq
  %v104 = vshrl.u32 %v103, 7
  %v105 = vsub.s32 2, %v104
  %v106 = vrot.slane %v93, %v105
  %v107 = vlaneseq
  %v108 = vshrl.u32 %v107, 7
  %v109 = vsub.s32 3, %v108
  %v110 = vrot.slane %v93, %v109
  %v117 = vunpack.c.l.b16 %v27
  %v118 = vunpack.c.h.b16 %v27
  %v119 = vunpack.c.l.b16 %v28
  %v120 = vunpack.c.h.b16 %v28
  %v121 = vpack.c.b16 %v119, %v117
  %v122 = vpack.c.b16 %v120, %v118
  %v189 = vunpack.c.l.b16 %v29
  %v190 = vunpack.c.h.b16 %v29
  %v191 = vunpack.c.l.b16 %v30
  %v192 = vunpack.c.h.b16 %v30
  %v193 = vunpack.c.l.b16 %v31
  %v194 = vunpack.c.h.b16 %v31
  %v195 = vunpack.c.l.b16 %v32
  %v196 = vunpack.c.h.b16 %v32
  %v197 = vunpack.c.l.b16 %v33
  %v198 = vunpack.c.h.b16 %v33
  %v199 = vunpack.c.l.b16 %v34
  %v200 = vunpack.c.h.b16 %v34
  %v201 = vunpack.c.l.b16 %v35
  %v202 = vunpack.c.h.b16 %v35
  %v203 = vunpack.c.l.b16 %v36
  %v204 = vunpack.c.h.b16 %v36
  %v205 = vunpack.c.l.b16 %v37
  %v206 = vunpack.c.h.b16 %v37
  %v207 = vunpack.c.l.b16 %v38
  %v208 = vunpack.c.h.b16 %v38
  %v209 = vunpack.c.l.b16 %v39
  %v210 = vunpack.c.h.b16 %v39
  %v211 = vunpack.c.l.b16 %v40
  %v212 = vunpack.c.h.b16 %v40
  %v213 = vunpack.c.l.b16 %v41
  %v214 = vunpack.c.h.b16 %v41
  %v215 = vunpack.c.l.b16 %v42
  %v216 = vunpack.c.h.b16 %v42
  %v217 = vunpack.c.l.b16 %v43
  %v218 = vunpack.c.h.b16 %v43
  %v219 = vunpack.c.l.b16 %v44
  %v220 = vunpack.c.h.b16 %v44
  %v221 = vunpack.c.l.b16 %v45
  %v222 = vunpack.c.h.b16 %v45
  %v223 = vunpack.c.l.b16 %v46
  %v224 = vunpack.c.h.b16 %v46
  %v225 = vunpack.c.l.b16 %v47
  %v226 = vunpack.c.h.b16 %v47
  %v227 = vunpack.c.l.b16 %v48
  %v228 = vunpack.c.h.b16 %v48
  %v229 = vunpack.c.l.b16 %v49
  %v230 = vunpack.c.h.b16 %v49
  %v231 = vunpack.c.l.b16 %v50
  %v232 = vunpack.c.h.b16 %v50
  %v233 = vunpack.c.l.b16 %v51
  %v234 = vunpack.c.h.b16 %v51
  %v235 = vunpack.c.l.b16 %v52
  %v236 = vunpack.c.h.b16 %v52
  %v237 = vunpack.c.l.b16 %v53
  %v238 = vunpack.c.h.b16 %v53
  %v239 = vunpack.c.l.b16 %v54
  %v240 = vunpack.c.h.b16 %v54
  %v241 = vunpack.c.l.b16 %v55
  %v242 = vunpack.c.h.b16 %v55
  %v243 = vunpack.c.l.b16 %v56
  %v244 = vunpack.c.h.b16 %v56
  %v245 = vunpack.c.l.b16 %v57
  %v246 = vunpack.c.h.b16 %v57
  %v247 = vunpack.c.l.b16 %v58
  %v248 = vunpack.c.h.b16 %v58
  %v249 = vunpack.c.l.b16 %v59
  %v250 = vunpack.c.h.b16 %v59
  %v251 = vunpack.c.l.b16 %v60
  %v252 = vunpack.c.h.b16 %v60
  %v253 = vunpack.c.l.b16 %v61
  %v254 = vunpack.c.h.b16 %v61
  %v255 = vunpack.c.l.b16 %v62
  %v256 = vunpack.c.h.b16 %v62
  %v257 = vunpack.c.l.b16 %v63
  %v258 = vunpack.c.h.b16 %v63
  %v259 = vunpack.c.l.b16 %v64
  %v260 = vunpack.c.h.b16 %v64
  %v261 = vunpack.c.l.b16 %v65
  %v262 = vunpack.c.h.b16 %v65
  %v263 = vunpack.c.l.b16 %v66
  %v264 = vunpack.c.h.b16 %v66
  %v265 = vunpack.c.l.b16 %v67
  %v266 = vunpack.c.h.b16 %v67
  %v267 = vunpack.c.l.b16 %v68
  %v268 = vunpack.c.h.b16 %v68
  %v269 = vunpack.c.l.b16 %v69
  %v270 = vunpack.c.h.b16 %v69
  %v271 = vunpack.c.l.b16 %v70
  %v272 = vunpack.c.h.b16 %v70
  %v273 = vunpack.c.l.b16 %v71
  %v274 = vunpack.c.h.b16 %v71
  %v275 = vunpack.c.l.b16 %v72
  %v276 = vunpack.c.h.b16 %v72
  %v277 = vunpack.c.l.b16 %v73
  %v278 = vunpack.c.h.b16 %v73
  %v279 = vunpack.c.l.b16 %v74
  %v280 = vunpack.c.h.b16 %v74
  %v281 = vunpack.c.l.b16 %v75
  %v282 = vunpack.c.h.b16 %v75
  %v283 = vunpack.c.l.b16 %v76
  %v284 = vunpack.c.h.b16 %v76
  %v285 = vunpack.c.l.b16 %v77
  %v286 = vunpack.c.h.b16 %v77
  %v287 = vunpack.c.l.b16 %v78
  %v288 = vunpack.c.h.b16 %v78
  %v289 = vunpack.c.l.b16 %v79
  %v290 = vunpack.c.h.b16 %v79
  %v291 = vunpack.c.l.b16 %v80
  %v292 = vunpack.c.h.b16 %v80
  %v293 = vunpack.c.l.b16 %v81
  %v294 = vunpack.c.h.b16 %v81
  %v295 = vunpack.c.l.b16 %v82
  %v296 = vunpack.c.h.b16 %v82
  %v297 = vunpack.c.l.b16 %v83
  %v298 = vunpack.c.h.b16 %v83
  %v299 = vunpack.c.l.b16 %v84
  %v300 = vunpack.c.h.b16 %v84
  %v301 = vunpack.c.l.b16 %v85
  %v302 = vunpack.c.h.b16 %v85
  %v303 = vunpack.c.l.b16 %v86
  %v304 = vunpack.c.h.b16 %v86
  %v305 = vunpack.c.l.b16 %v87
  %v306 = vunpack.c.h.b16 %v87
  %v307 = vunpack.c.l.b16 %v88
  %v308 = vunpack.c.h.b16 %v88
  %v309 = vunpack.c.l.b16 %v89
  %v310 = vunpack.c.h.b16 %v89
  %v311 = vunpack.c.l.b16 %v90
  %v312 = vunpack.c.h.b16 %v90
  %v313 = vunpack.c.l.b16 %v91
  %v314 = vunpack.c.h.b16 %v91
  %v315 = vunpack.c.l.b16 %v92
  %v316 = vunpack.c.h.b16 %v92
  %v317 = vpack.c.b16 %v193, %v189
  %v318 = vpack.c.b16 %v194, %v190
  %v319 = vpack.c.b16 %v195, %v191
  %v320 = vpack.c.b16 %v196, %v192
  %v321 = vpack.c.b16 %v201, %v197
  %v322 = vpack.c.b16 %v202, %v198
  %v323 = vpack.c.b16 %v203, %v199
  %v324 = vpack.c.b16 %v204, %v200
  %v325 = vpack.c.b16 %v209, %v205
  %v326 = vpack.c.b16 %v210, %v206
  %v327 = vpack.c.b16 %v211, %v207
  %v328 = vpack.c.b16 %v212, %v208
  %v329 = vpack.c.b16 %v217, %v213
  %v330 = vpack.c.b16 %v218, %v214
  %v331 = vpack.c.b16 %v219, %v215
  %v332 = vpack.c.b16 %v220, %v216
  %v333 = vpack.c.b16 %v225, %v221
  %v334 = vpack.c.b16 %v226, %v222
  %v335 = vpack.c.b16 %v227, %v223
  %v336 = vpack.c.b16 %v228, %v224
  %v337 = vpack.c.b16 %v233, %v229
  %v338 = vpack.c.b16 %v234, %v230
  %v339 = vpack.c.b16 %v235, %v231
  %v340 = vpack.c.b16 %v236, %v232
  %v341 = vpack.c.b16 %v241, %v237
  %v342 = vpack.c.b16 %v242, %v238
  %v343 = vpack.c.b16 %v243, %v239
  %v344 = vpack.c.b16 %v244, %v240
  %v345 = vpack.c.b16 %v249, %v245
  %v346 = vpack.c.b16 %v250, %v246
  %v347 = vpack.c.b16 %v251, %v247
  %v348 = vpack.c.b16 %v252, %v248
  %v349 = vpack.c.b16 %v257, %v253
  %v350 = vpack.c.b16 %v258, %v254
  %v351 = vpack.c.b16 %v259, %v255
  %v352 = vpack.c.b16 %v260, %v256
  %v353 = vpack.c.b16 %v265, %v261
  %v354 = vpack.c.b16 %v266, %v262
  %v355 = vpack.c.b16 %v267, %v263
  %v356 = vpack.c.b16 %v268, %v264
  %v357 = vpack.c.b16 %v273, %v269
  %v358 = vpack.c.b16 %v274, %v270
  %v359 = vpack.c.b16 %v275, %v271
  %v360 = vpack.c.b16 %v276, %v272
  %v361 = vpack.c.b16 %v281, %v277
  %v362 = vpack.c.b16 %v282, %v278
  %v363 = vpack.c.b16 %v283, %v279
  %v364 = vpack.c.b16 %v284, %v280
  %v365 = vpack.c.b16 %v289, %v285
  %v366 = vpack.c.b16 %v290, %v286
  %v367 = vpack.c.b16 %v291, %v287
  %v368 = vpack.c.b16 %v292, %v288
  %v369 = vpack.c.b16 %v297, %v293
  %v370 = vpack.c.b16 %v298, %v294
  %v371 = vpack.c.b16 %v299, %v295
  %v372 = vpack.c.b16 %v300, %v296
  %v373 = vpack.c.b16 %v305, %v301
  %v374 = vpack.c.b16 %v306, %v302
  %v375 = vpack.c.b16 %v307, %v303
  %v376 = vpack.c.b16 %v308, %v304
  %v377 = vpack.c.b16 %v313, %v309
  %v378 = vpack.c.b16 %v314, %v310
  %v379 = vpack.c.b16 %v315, %v311
  %v380 = vpack.c.b16 %v316, %v312
  %445 = vmatprep.subr.bf16.mxu0 %v318
  %446 = vmatpush1.bf16.msra.mxu0 %v317
  %447 = vmatprep.subr.bf16.mxu0 %v322
  %448 = vmatpush1.bf16.msra.mxu0 %v321
  %449 = vmatprep.subr.bf16.mxu0 %v326
  %450 = vmatpush1.bf16.msra.mxu0 %v325
  %451 = vmatprep.subr.bf16.mxu0 %v330
  %452 = vmatpush1.bf16.msra.mxu0 %v329
  %453 = vmatprep.subr.bf16.mxu0 %v334
  %454 = vmatpush1.bf16.msra.mxu0 %v333
  %455 = vmatprep.subr.bf16.mxu0 %v338
  %456 = vmatpush1.bf16.msra.mxu0 %v337
  %457 = vmatprep.subr.bf16.mxu0 %v342
  %458 = vmatpush1.bf16.msra.mxu0 %v341
  %459 = vmatprep.subr.bf16.mxu0 %v346
  %460 = vmatpush1.bf16.msra.mxu0 %v345
  %461 = vmatprep.subr.bf16.mxu0 %v350
  %462 = vmatpush1.bf16.msra.mxu0 %v349
  %463 = vmatprep.subr.bf16.mxu0 %v354
  %464 = vmatpush1.bf16.msra.mxu0 %v353
  %465 = vmatprep.subr.bf16.mxu0 %v358
  %466 = vmatpush1.bf16.msra.mxu0 %v357
  %467 = vmatprep.subr.bf16.mxu0 %v362
  %468 = vmatpush1.bf16.msra.mxu0 %v361
  %469 = vmatprep.subr.bf16.mxu0 %v366
  %470 = vmatpush1.bf16.msra.mxu0 %v365
  %471 = vmatprep.subr.bf16.mxu0 %v370
  %472 = vmatpush1.bf16.msra.mxu0 %v369
  %473 = vmatprep.subr.bf16.mxu0 %v374
  %474 = vmatpush1.bf16.msra.mxu0 %v373
  %475 = vmatprep.subr.bf16.mxu0 %v378
  %476 = vmatpush1.bf16.msra.mxu0 %v377
  %477 = vmatprep.mubr.bf16.mxu0 %v122
  %478 = vmatmul.mubr.bf16.gmra.mrb[0].mxu0 %v121
  %v479 = vpop.f32.mrb[0].mxu0
  %v480 = vadd.f32 %v98, %v479
  %v481 = vpop.f32.mrb[0].mxu0
  %v482 = vadd.f32 %v102, %v481
  %v483 = vpop.f32.mrb[0].mxu0
  %v484 = vadd.f32 %v98, %v483
  %v485 = vpop.f32.mrb[0].mxu0
  %v486 = vadd.f32 %v102, %v485
  %487 = vdwg.mxu0
  %488 = vmatprep.subr.bf16.mxu0 %v320
  %489 = vmatpush1.bf16.msra.mxu0 %v319
  %490 = vmatprep.subr.bf16.mxu0 %v324
  %491 = vmatpush1.bf16.msra.mxu0 %v323
  %492 = vmatprep.subr.bf16.mxu0 %v328
  %493 = vmatpush1.bf16.msra.mxu0 %v327
  %494 = vmatprep.subr.bf16.mxu0 %v332
  %495 = vmatpush1.bf16.msra.mxu0 %v331
  %496 = vmatprep.subr.bf16.mxu0 %v336
  %497 = vmatpush1.bf16.msra.mxu0 %v335
  %498 = vmatprep.subr.bf16.mxu0 %v340
  %499 = vmatpush1.bf16.msra.mxu0 %v339
  %500 = vmatprep.subr.bf16.mxu0 %v344
  %501 = vmatpush1.bf16.msra.mxu0 %v343
  %502 = vmatprep.subr.bf16.mxu0 %v348
  %503 = vmatpush1.bf16.msra.mxu0 %v347
  %504 = vmatprep.subr.bf16.mxu0 %v352
  %505 = vmatpush1.bf16.msra.mxu0 %v351
  %506 = vmatprep.subr.bf16.mxu0 %v356
  %507 = vmatpush1.bf16.msra.mxu0 %v355
  %508 = vmatprep.subr.bf16.mxu0 %v360
  %509 = vmatpush1.bf16.msra.mxu0 %v359
  %510 = vmatprep.subr.bf16.mxu0 %v364
  %511 = vmatpush1.bf16.msra.mxu0 %v363
  %512 = vmatprep.subr.bf16.mxu0 %v368
  %513 = vmatpush1.bf16.msra.mxu0 %v367
  %514 = vmatprep.subr.bf16.mxu0 %v372
  %515 = vmatpush1.bf16.msra.mxu0 %v371
  %516 = vmatprep.subr.bf16.mxu0 %v376
  %517 = vmatpush1.bf16.msra.mxu0 %v375
  %518 = vmatprep.subr.bf16.mxu0 %v380
  %519 = vmatpush1.bf16.msra.mxu0 %v379
  %520 = vmatprep.mubr.bf16.mxu0 %v122
  %521 = vmatmul.mubr.bf16.gmra.mrb[0].mxu0 %v121
  %v522 = vpop.f32.mrb[0].mxu0
  %v523 = vadd.f32 %v106, %v522
  %v524 = vpop.f32.mrb[0].mxu0
  %v525 = vadd.f32 %v110, %v524
  %v526 = vpop.f32.mrb[0].mxu0
  %v527 = vadd.f32 %v106, %v526
  %v528 = vpop.f32.mrb[0].mxu0
  %v529 = vadd.f32 %v110, %v528
  %530 = vdwg.mxu0
  %v531 = vmax.f32 %v480, 0.0
  %v532 = vmax.f32 %v482, 0.0
  %v533 = vmax.f32 %v523, 0.0
  %v534 = vmax.f32 %v525, 0.0
  %v535 = vmax.f32 %v484, 0.0
  %v536 = vmax.f32 %v486, 0.0
  %v537 = vmax.f32 %v527, 0.0
  %v538 = vmax.f32 %v529, 0.0
  %v539 = vpack.c.bf16 %v535, %v531
  %v540 = vpack.c.bf16 %v536, %v532
  %v541 = vpack.c.bf16 %v537, %v533
  %v542 = vpack.c.bf16 %v538, %v534
  %v543 = vld [vmem:[%s3] sm:$0xff]
  %v544 = vld [vmem:[%s3 + $0x8] sm:$0xff]
  %v545 = vld [vmem:[%s3 + $0x10] sm:$0xff]
  %v546 = vld [vmem:[%s3 + $0x18] sm:$0xff]
  %v547 = vld [vmem:[%s3 + $0x20] sm:$0xff]
  %v548 = vld [vmem:[%s3 + $0x28] sm:$0xff]
  %v549 = vld [vmem:[%s3 + $0x30] sm:$0xff]
  %v550 = vld [vmem:[%s3 + $0x38] sm:$0xff]
  %v551 = vld [vmem:[%s3 + $0x40] sm:$0xff]
  %v552 = vld [vmem:[%s3 + $0x48] sm:$0xff]
  %v553 = vld [vmem:[%s3 + $0x50] sm:$0xff]
  %v554 = vld [vmem:[%s3 + $0x58] sm:$0xff]
  %v555 = vld [vmem:[%s3 + $0x60] sm:$0xff]
  %v556 = vld [vmem:[%s3 + $0x68] sm:$0xff]
  %v557 = vld [vmem:[%s3 + $0x70] sm:$0xff]
  %v558 = vld [vmem:[%s3 + $0x78] sm:$0xff]
  %v559 = vld [vmem:[%s3 + $0x80] sm:$0xff]
  %v560 = vld [vmem:[%s3 + $0x88] sm:$0xff]
  %v561 = vld [vmem:[%s3 + $0x90] sm:$0xff]
  %v562 = vld [vmem:[%s3 + $0x98] sm:$0xff]
  %v563 = vld [vmem:[%s3 + $0xa0] sm:$0xff]
  %v564 = vld [vmem:[%s3 + $0xa8] sm:$0xff]
  %v565 = vld [vmem:[%s3 + $0xb0] sm:$0xff]
  %v566 = vld [vmem:[%s3 + $0xb8] sm:$0xff]
  %v567 = vld [vmem:[%s3 + $0xc0] sm:$0xff]
  %v568 = vld [vmem:[%s3 + $0xc8] sm:$0xff]
  %v569 = vld [vmem:[%s3 + $0xd0] sm:$0xff]
  %v570 = vld [vmem:[%s3 + $0xd8] sm:$0xff]
  %v571 = vld [vmem:[%s3 + $0xe0] sm:$0xff]
  %v572 = vld [vmem:[%s3 + $0xe8] sm:$0xff]
  %v573 = vld [vmem:[%s3 + $0xf0] sm:$0xff]
  %v574 = vld [vmem:[%s3 + $0xf8] sm:$0xff]
  %v575 = vld [vmem:[%s3 + $0x100] sm:$0xff]
  %v576 = vld [vmem:[%s3 + $0x108] sm:$0xff]
  %v577 = vld [vmem:[%s3 + $0x110] sm:$0xff]
  %v578 = vld [vmem:[%s3 + $0x118] sm:$0xff]
  %v579 = vld [vmem:[%s3 + $0x120] sm:$0xff]
  %v580 = vld [vmem:[%s3 + $0x128] sm:$0xff]
  %v581 = vld [vmem:[%s3 + $0x130] sm:$0xff]
  %v582 = vld [vmem:[%s3 + $0x138] sm:$0xff]
  %v583 = vld [vmem:[%s3 + $0x140] sm:$0xff]
  %v584 = vld [vmem:[%s3 + $0x148] sm:$0xff]
  %v585 = vld [vmem:[%s3 + $0x150] sm:$0xff]
  %v586 = vld [vmem:[%s3 + $0x158] sm:$0xff]
  %v587 = vld [vmem:[%s3 + $0x160] sm:$0xff]
  %v588 = vld [vmem:[%s3 + $0x168] sm:$0xff]
  %v589 = vld [vmem:[%s3 + $0x170] sm:$0xff]
  %v590 = vld [vmem:[%s3 + $0x178] sm:$0xff]
  %v591 = vld [vmem:[%s3 + $0x180] sm:$0xff]
  %v592 = vld [vmem:[%s3 + $0x188] sm:$0xff]
  %v593 = vld [vmem:[%s3 + $0x190] sm:$0xff]
  %v594 = vld [vmem:[%s3 + $0x198] sm:$0xff]
  %v595 = vld [vmem:[%s3 + $0x1a0] sm:$0xff]
  %v596 = vld [vmem:[%s3 + $0x1a8] sm:$0xff]
  %v597 = vld [vmem:[%s3 + $0x1b0] sm:$0xff]
  %v598 = vld [vmem:[%s3 + $0x1b8] sm:$0xff]
  %v599 = vld [vmem:[%s3 + $0x1c0] sm:$0xff]
  %v600 = vld [vmem:[%s3 + $0x1c8] sm:$0xff]
  %v601 = vld [vmem:[%s3 + $0x1d0] sm:$0xff]
  %v602 = vld [vmem:[%s3 + $0x1d8] sm:$0xff]
  %v603 = vld [vmem:[%s3 + $0x1e0] sm:$0xff]
  %v604 = vld [vmem:[%s3 + $0x1e8] sm:$0xff]
  %v605 = vld [vmem:[%s3 + $0x1f0] sm:$0xff]
  %v606 = vld [vmem:[%s3 + $0x1f8] sm:$0xff]
  %v607 = vld [vmem:[%s3 + $0x200] sm:$0xff]
  %v608 = vld [vmem:[%s3 + $0x208] sm:$0xff]
  %v609 = vld [vmem:[%s3 + $0x210] sm:$0xff]
  %v610 = vld [vmem:[%s3 + $0x218] sm:$0xff]
  %v611 = vld [vmem:[%s3 + $0x220] sm:$0xff]
  %v612 = vld [vmem:[%s3 + $0x228] sm:$0xff]
  %v613 = vld [vmem:[%s3 + $0x230] sm:$0xff]
  %v614 = vld [vmem:[%s3 + $0x238] sm:$0xff]
  %v615 = vld [vmem:[%s3 + $0x240] sm:$0xff]
  %v616 = vld [vmem:[%s3 + $0x248] sm:$0xff]
  %v617 = vld [vmem:[%s3 + $0x250] sm:$0xff]
  %v618 = vld [vmem:[%s3 + $0x258] sm:$0xff]
  %v619 = vld [vmem:[%s3 + $0x260] sm:$0xff]
  %v620 = vld [vmem:[%s3 + $0x268] sm:$0xff]
  %v621 = vld [vmem:[%s3 + $0x270] sm:$0xff]
  %v622 = vld [vmem:[%s3 + $0x278] sm:$0xff]
  %v623 = vld [vmem:[%s3 + $0x280] sm:$0xff]
  %v624 = vld [vmem:[%s3 + $0x288] sm:$0xff]
  %v625 = vld [vmem:[%s3 + $0x290] sm:$0xff]
  %v626 = vld [vmem:[%s3 + $0x298] sm:$0xff]
  %v627 = vld [vmem:[%s3 + $0x2a0] sm:$0xff]
  %v628 = vld [vmem:[%s3 + $0x2a8] sm:$0xff]
  %v629 = vld [vmem:[%s3 + $0x2b0] sm:$0xff]
  %v630 = vld [vmem:[%s3 + $0x2b8] sm:$0xff]
  %v631 = vld [vmem:[%s3 + $0x2c0] sm:$0xff]
  %v632 = vld [vmem:[%s3 + $0x2c8] sm:$0xff]
  %v633 = vld [vmem:[%s3 + $0x2d0] sm:$0xff]
  %v634 = vld [vmem:[%s3 + $0x2d8] sm:$0xff]
  %v635 = vld [vmem:[%s3 + $0x2e0] sm:$0xff]
  %v636 = vld [vmem:[%s3 + $0x2e8] sm:$0xff]
  %v637 = vld [vmem:[%s3 + $0x2f0] sm:$0xff]
  %v638 = vld [vmem:[%s3 + $0x2f8] sm:$0xff]
  %v639 = vld [vmem:[%s3 + $0x300] sm:$0xff]
  %v640 = vld [vmem:[%s3 + $0x308] sm:$0xff]
  %v641 = vld [vmem:[%s3 + $0x310] sm:$0xff]
  %v642 = vld [vmem:[%s3 + $0x318] sm:$0xff]
  %v643 = vld [vmem:[%s3 + $0x320] sm:$0xff]
  %v644 = vld [vmem:[%s3 + $0x328] sm:$0xff]
  %v645 = vld [vmem:[%s3 + $0x330] sm:$0xff]
  %v646 = vld [vmem:[%s3 + $0x338] sm:$0xff]
  %v647 = vld [vmem:[%s3 + $0x340] sm:$0xff]
  %v648 = vld [vmem:[%s3 + $0x348] sm:$0xff]
  %v649 = vld [vmem:[%s3 + $0x350] sm:$0xff]
  %v650 = vld [vmem:[%s3 + $0x358] sm:$0xff]
  %v651 = vld [vmem:[%s3 + $0x360] sm:$0xff]
  %v652 = vld [vmem:[%s3 + $0x368] sm:$0xff]
  %v653 = vld [vmem:[%s3 + $0x370] sm:$0xff]
  %v654 = vld [vmem:[%s3 + $0x378] sm:$0xff]
  %v655 = vld [vmem:[%s3 + $0x380] sm:$0xff]
  %v656 = vld [vmem:[%s3 + $0x388] sm:$0xff]
  %v657 = vld [vmem:[%s3 + $0x390] sm:$0xff]
  %v658 = vld [vmem:[%s3 + $0x398] sm:$0xff]
  %v659 = vld [vmem:[%s3 + $0x3a0] sm:$0xff]
  %v660 = vld [vmem:[%s3 + $0x3a8] sm:$0xff]
  %v661 = vld [vmem:[%s3 + $0x3b0] sm:$0xff]
  %v662 = vld [vmem:[%s3 + $0x3b8] sm:$0xff]
  %v663 = vld [vmem:[%s3 + $0x3c0] sm:$0xff]
  %v664 = vld [vmem:[%s3 + $0x3c8] sm:$0xff]
  %v665 = vld [vmem:[%s3 + $0x3d0] sm:$0xff]
  %v666 = vld [vmem:[%s3 + $0x3d8] sm:$0xff]
  %v667 = vld [vmem:[%s3 + $0x3e0] sm:$0xff]
  %v668 = vld [vmem:[%s3 + $0x3e8] sm:$0xff]
  %v669 = vld [vmem:[%s3 + $0x3f0] sm:$0xff]
  %v670 = vld [vmem:[%s3 + $0x3f8] sm:$0xff]
  %v671 = vld [vmem:[%s3 + $0x400] sm:$0xff]
  %v672 = vld [vmem:[%s3 + $0x408] sm:$0xff]
  %v673 = vld [vmem:[%s3 + $0x410] sm:$0xff]
  %v674 = vld [vmem:[%s3 + $0x418] sm:$0xff]
  %v675 = vld [vmem:[%s3 + $0x420] sm:$0xff]
  %v676 = vld [vmem:[%s3 + $0x428] sm:$0xff]
  %v677 = vld [vmem:[%s3 + $0x430] sm:$0xff]
  %v678 = vld [vmem:[%s3 + $0x438] sm:$0xff]
  %v679 = vld [vmem:[%s3 + $0x440] sm:$0xff]
  %v680 = vld [vmem:[%s3 + $0x448] sm:$0xff]
  %v681 = vld [vmem:[%s3 + $0x450] sm:$0xff]
  %v682 = vld [vmem:[%s3 + $0x458] sm:$0xff]
  %v683 = vld [vmem:[%s3 + $0x460] sm:$0xff]
  %v684 = vld [vmem:[%s3 + $0x468] sm:$0xff]
  %v685 = vld [vmem:[%s3 + $0x470] sm:$0xff]
  %v686 = vld [vmem:[%s3 + $0x478] sm:$0xff]
  %v687 = vld [vmem:[%s3 + $0x480] sm:$0xff]
  %v688 = vld [vmem:[%s3 + $0x488] sm:$0xff]
  %v689 = vld [vmem:[%s3 + $0x490] sm:$0xff]
  %v690 = vld [vmem:[%s3 + $0x498] sm:$0xff]
  %v691 = vld [vmem:[%s3 + $0x4a0] sm:$0xff]
  %v692 = vld [vmem:[%s3 + $0x4a8] sm:$0xff]
  %v693 = vld [vmem:[%s3 + $0x4b0] sm:$0xff]
  %v694 = vld [vmem:[%s3 + $0x4b8] sm:$0xff]
  %v695 = vld [vmem:[%s3 + $0x4c0] sm:$0xff]
  %v696 = vld [vmem:[%s3 + $0x4c8] sm:$0xff]
  %v697 = vld [vmem:[%s3 + $0x4d0] sm:$0xff]
  %v698 = vld [vmem:[%s3 + $0x4d8] sm:$0xff]
  %v699 = vld [vmem:[%s3 + $0x4e0] sm:$0xff]
  %v700 = vld [vmem:[%s3 + $0x4e8] sm:$0xff]
  %v701 = vld [vmem:[%s3 + $0x4f0] sm:$0xff]
  %v702 = vld [vmem:[%s3 + $0x4f8] sm:$0xff]
  %v703 = vld [vmem:[%s3 + $0x500] sm:$0xff]
  %v704 = vld [vmem:[%s3 + $0x508] sm:$0xff]
  %v705 = vld [vmem:[%s3 + $0x510] sm:$0xff]
  %v706 = vld [vmem:[%s3 + $0x518] sm:$0xff]
  %v707 = vld [vmem:[%s3 + $0x520] sm:$0xff]
  %v708 = vld [vmem:[%s3 + $0x528] sm:$0xff]
  %v709 = vld [vmem:[%s3 + $0x530] sm:$0xff]
  %v710 = vld [vmem:[%s3 + $0x538] sm:$0xff]
  %v711 = vld [vmem:[%s3 + $0x540] sm:$0xff]
  %v712 = vld [vmem:[%s3 + $0x548] sm:$0xff]
  %v713 = vld [vmem:[%s3 + $0x550] sm:$0xff]
  %v714 = vld [vmem:[%s3 + $0x558] sm:$0xff]
  %v715 = vld [vmem:[%s3 + $0x560] sm:$0xff]
  %v716 = vld [vmem:[%s3 + $0x568] sm:$0xff]
  %v717 = vld [vmem:[%s3 + $0x570] sm:$0xff]
  %v718 = vld [vmem:[%s3 + $0x578] sm:$0xff]
  %v719 = vld [vmem:[%s3 + $0x580] sm:$0xff]
  %v720 = vld [vmem:[%s3 + $0x588] sm:$0xff]
  %v721 = vld [vmem:[%s3 + $0x590] sm:$0xff]
  %v722 = vld [vmem:[%s3 + $0x598] sm:$0xff]
  %v723 = vld [vmem:[%s3 + $0x5a0] sm:$0xff]
  %v724 = vld [vmem:[%s3 + $0x5a8] sm:$0xff]
  %v725 = vld [vmem:[%s3 + $0x5b0] sm:$0xff]
  %v726 = vld [vmem:[%s3 + $0x5b8] sm:$0xff]
  %v727 = vld [vmem:[%s3 + $0x5c0] sm:$0xff]
  %v728 = vld [vmem:[%s3 + $0x5c8] sm:$0xff]
  %v729 = vld [vmem:[%s3 + $0x5d0] sm:$0xff]
  %v730 = vld [vmem:[%s3 + $0x5d8] sm:$0xff]
  %v731 = vld [vmem:[%s3 + $0x5e0] sm:$0xff]
  %v732 = vld [vmem:[%s3 + $0x5e8] sm:$0xff]
  %v733 = vld [vmem:[%s3 + $0x5f0] sm:$0xff]
  %v734 = vld [vmem:[%s3 + $0x5f8] sm:$0xff]
  %v735 = vld [vmem:[%s3 + $0x600] sm:$0xff]
  %v736 = vld [vmem:[%s3 + $0x608] sm:$0xff]
  %v737 = vld [vmem:[%s3 + $0x610] sm:$0xff]
  %v738 = vld [vmem:[%s3 + $0x618] sm:$0xff]
  %v739 = vld [vmem:[%s3 + $0x620] sm:$0xff]
  %v740 = vld [vmem:[%s3 + $0x628] sm:$0xff]
  %v741 = vld [vmem:[%s3 + $0x630] sm:$0xff]
  %v742 = vld [vmem:[%s3 + $0x638] sm:$0xff]
  %v743 = vld [vmem:[%s3 + $0x640] sm:$0xff]
  %v744 = vld [vmem:[%s3 + $0x648] sm:$0xff]
  %v745 = vld [vmem:[%s3 + $0x650] sm:$0xff]
  %v746 = vld [vmem:[%s3 + $0x658] sm:$0xff]
  %v747 = vld [vmem:[%s3 + $0x660] sm:$0xff]
  %v748 = vld [vmem:[%s3 + $0x668] sm:$0xff]
  %v749 = vld [vmem:[%s3 + $0x670] sm:$0xff]
  %v750 = vld [vmem:[%s3 + $0x678] sm:$0xff]
  %v751 = vld [vmem:[%s3 + $0x680] sm:$0xff]
  %v752 = vld [vmem:[%s3 + $0x688] sm:$0xff]
  %v753 = vld [vmem:[%s3 + $0x690] sm:$0xff]
  %v754 = vld [vmem:[%s3 + $0x698] sm:$0xff]
  %v755 = vld [vmem:[%s3 + $0x6a0] sm:$0xff]
  %v756 = vld [vmem:[%s3 + $0x6a8] sm:$0xff]
  %v757 = vld [vmem:[%s3 + $0x6b0] sm:$0xff]
  %v758 = vld [vmem:[%s3 + $0x6b8] sm:$0xff]
  %v759 = vld [vmem:[%s3 + $0x6c0] sm:$0xff]
  %v760 = vld [vmem:[%s3 + $0x6c8] sm:$0xff]
  %v761 = vld [vmem:[%s3 + $0x6d0] sm:$0xff]
  %v762 = vld [vmem:[%s3 + $0x6d8] sm:$0xff]
  %v763 = vld [vmem:[%s3 + $0x6e0] sm:$0xff]
  %v764 = vld [vmem:[%s3 + $0x6e8] sm:$0xff]
  %v765 = vld [vmem:[%s3 + $0x6f0] sm:$0xff]
  %v766 = vld [vmem:[%s3 + $0x6f8] sm:$0xff]
  %v767 = vld [vmem:[%s3 + $0x700] sm:$0xff]
  %v768 = vld [vmem:[%s3 + $0x708] sm:$0xff]
  %v769 = vld [vmem:[%s3 + $0x710] sm:$0xff]
  %v770 = vld [vmem:[%s3 + $0x718] sm:$0xff]
  %v771 = vld [vmem:[%s3 + $0x720] sm:$0xff]
  %v772 = vld [vmem:[%s3 + $0x728] sm:$0xff]
  %v773 = vld [vmem:[%s3 + $0x730] sm:$0xff]
  %v774 = vld [vmem:[%s3 + $0x738] sm:$0xff]
  %v775 = vld [vmem:[%s3 + $0x740] sm:$0xff]
  %v776 = vld [vmem:[%s3 + $0x748] sm:$0xff]
  %v777 = vld [vmem:[%s3 + $0x750] sm:$0xff]
  %v778 = vld [vmem:[%s3 + $0x758] sm:$0xff]
  %v779 = vld [vmem:[%s3 + $0x760] sm:$0xff]
  %v780 = vld [vmem:[%s3 + $0x768] sm:$0xff]
  %v781 = vld [vmem:[%s3 + $0x770] sm:$0xff]
  %v782 = vld [vmem:[%s3 + $0x778] sm:$0xff]
  %v783 = vld [vmem:[%s3 + $0x780] sm:$0xff]
  %v784 = vld [vmem:[%s3 + $0x788] sm:$0xff]
  %v785 = vld [vmem:[%s3 + $0x790] sm:$0xff]
  %v786 = vld [vmem:[%s3 + $0x798] sm:$0xff]
  %v787 = vld [vmem:[%s3 + $0x7a0] sm:$0xff]
  %v788 = vld [vmem:[%s3 + $0x7a8] sm:$0xff]
  %v789 = vld [vmem:[%s3 + $0x7b0] sm:$0xff]
  %v790 = vld [vmem:[%s3 + $0x7b8] sm:$0xff]
  %v791 = vld [vmem:[%s3 + $0x7c0] sm:$0xff]
  %v792 = vld [vmem:[%s3 + $0x7c8] sm:$0xff]
  %v793 = vld [vmem:[%s3 + $0x7d0] sm:$0xff]
  %v794 = vld [vmem:[%s3 + $0x7d8] sm:$0xff]
  %v795 = vld [vmem:[%s3 + $0x7e0] sm:$0xff]
  %v796 = vld [vmem:[%s3 + $0x7e8] sm:$0xff]
  %v797 = vld [vmem:[%s3 + $0x7f0] sm:$0xff]
  %v798 = vld [vmem:[%s3 + $0x7f8] sm:$0xff]
  %v799 = vld [vmem:[%s4] sm:$0xff]
  %v801 = vlaneseq
  %v802 = vshrl.u32 %v801, 7
  %v803 = vsub.s32 0, %v802
  %v804 = vrot.slane %v799, %v803
  %v805 = vlaneseq
  %v806 = vshrl.u32 %v805, 7
  %v807 = vsub.s32 1, %v806
  %v808 = vrot.slane %v799, %v807
  %v809 = vlaneseq
  %v810 = vshrl.u32 %v809, 7
  %v811 = vsub.s32 2, %v810
  %v812 = vrot.slane %v799, %v811
  %v813 = vlaneseq
  %v814 = vshrl.u32 %v813, 7
  %v815 = vsub.s32 3, %v814
  %v816 = vrot.slane %v799, %v815
  %v817 = vlaneseq
  %v818 = vshrl.u32 %v817, 7
  %v819 = vsub.s32 4, %v818
  %v820 = vrot.slane %v799, %v819
  %v821 = vlaneseq
  %v822 = vshrl.u32 %v821, 7
  %v823 = vsub.s32 5, %v822
  %v824 = vrot.slane %v799, %v823
  %v825 = vlaneseq
  %v826 = vshrl.u32 %v825, 7
  %v827 = vsub.s32 6, %v826
  %v828 = vrot.slane %v799, %v827
  %v829 = vlaneseq
  %v830 = vshrl.u32 %v829, 7
  %v831 = vsub.s32 7, %v830
  %v832 = vrot.slane %v799, %v831
  %v1097 = vunpack.c.l.b16 %v543
  %v1098 = vunpack.c.h.b16 %v543
  %v1099 = vunpack.c.l.b16 %v544
  %v1100 = vunpack.c.h.b16 %v544
  %v1101 = vunpack.c.l.b16 %v545
  %v1102 = vunpack.c.h.b16 %v545
  %v1103 = vunpack.c.l.b16 %v546
  %v1104 = vunpack.c.h.b16 %v546
  %v1105 = vunpack.c.l.b16 %v547
  %v1106 = vunpack.c.h.b16 %v547
  %v1107 = vunpack.c.l.b16 %v548
  %v1108 = vunpack.c.h.b16 %v548
  %v1109 = vunpack.c.l.b16 %v549
  %v1110 = vunpack.c.h.b16 %v549
  %v1111 = vunpack.c.l.b16 %v550
  %v1112 = vunpack.c.h.b16 %v550
  %v1113 = vunpack.c.l.b16 %v551
  %v1114 = vunpack.c.h.b16 %v551
  %v1115 = vunpack.c.l.b16 %v552
  %v1116 = vunpack.c.h.b16 %v552
  %v1117 = vunpack.c.l.b16 %v553
  %v1118 = vunpack.c.h.b16 %v553
  %v1119 = vunpack.c.l.b16 %v554
  %v1120 = vunpack.c.h.b16 %v554
  %v1121 = vunpack.c.l.b16 %v555
  %v1122 = vunpack.c.h.b16 %v555
  %v1123 = vunpack.c.l.b16 %v556
  %v1124 = vunpack.c.h.b16 %v556
  %v1125 = vunpack.c.l.b16 %v557
  %v1126 = vunpack.c.h.b16 %v557
  %v1127 = vunpack.c.l.b16 %v558
  %v1128 = vunpack.c.h.b16 %v558
  %v1129 = vunpack.c.l.b16 %v559
  %v1130 = vunpack.c.h.b16 %v559
  %v1131 = vunpack.c.l.b16 %v560
  %v1132 = vunpack.c.h.b16 %v560
  %v1133 = vunpack.c.l.b16 %v561
  %v1134 = vunpack.c.h.b16 %v561
  %v1135 = vunpack.c.l.b16 %v562
  %v1136 = vunpack.c.h.b16 %v562
  %v1137 = vunpack.c.l.b16 %v563
  %v1138 = vunpack.c.h.b16 %v563
  %v1139 = vunpack.c.l.b16 %v564
  %v1140 = vunpack.c.h.b16 %v564
  %v1141 = vunpack.c.l.b16 %v565
  %v1142 = vunpack.c.h.b16 %v565
  %v1143 = vunpack.c.l.b16 %v566
  %v1144 = vunpack.c.h.b16 %v566
  %v1145 = vunpack.c.l.b16 %v567
  %v1146 = vunpack.c.h.b16 %v567
  %v1147 = vunpack.c.l.b16 %v568
  %v1148 = vunpack.c.h.b16 %v568
  %v1149 = vunpack.c.l.b16 %v569
  %v1150 = vunpack.c.h.b16 %v569
  %v1151 = vunpack.c.l.b16 %v570
  %v1152 = vunpack.c.h.b16 %v570
  %v1153 = vunpack.c.l.b16 %v571
  %v1154 = vunpack.c.h.b16 %v571
  %v1155 = vunpack.c.l.b16 %v572
  %v1156 = vunpack.c.h.b16 %v572
  %v1157 = vunpack.c.l.b16 %v573
  %v1158 = vunpack.c.h.b16 %v573
  %v1159 = vunpack.c.l.b16 %v574
  %v1160 = vunpack.c.h.b16 %v574
  %v1161 = vunpack.c.l.b16 %v575
  %v1162 = vunpack.c.h.b16 %v575
  %v1163 = vunpack.c.l.b16 %v576
  %v1164 = vunpack.c.h.b16 %v576
  %v1165 = vunpack.c.l.b16 %v577
  %v1166 = vunpack.c.h.b16 %v577
  %v1167 = vunpack.c.l.b16 %v578
  %v1168 = vunpack.c.h.b16 %v578
  %v1169 = vunpack.c.l.b16 %v579
  %v1170 = vunpack.c.h.b16 %v579
  %v1171 = vunpack.c.l.b16 %v580
  %v1172 = vunpack.c.h.b16 %v580
  %v1173 = vunpack.c.l.b16 %v581
  %v1174 = vunpack.c.h.b16 %v581
  %v1175 = vunpack.c.l.b16 %v582
  %v1176 = vunpack.c.h.b16 %v582
  %v1177 = vunpack.c.l.b16 %v583
  %v1178 = vunpack.c.h.b16 %v583
  %v1179 = vunpack.c.l.b16 %v584
  %v1180 = vunpack.c.h.b16 %v584
  %v1181 = vunpack.c.l.b16 %v585
  %v1182 = vunpack.c.h.b16 %v585
  %v1183 = vunpack.c.l.b16 %v586
  %v1184 = vunpack.c.h.b16 %v586
  %v1185 = vunpack.c.l.b16 %v587
  %v1186 = vunpack.c.h.b16 %v587
  %v1187 = vunpack.c.l.b16 %v588
  %v1188 = vunpack.c.h.b16 %v588
  %v1189 = vunpack.c.l.b16 %v589
  %v1190 = vunpack.c.h.b16 %v589
  %v1191 = vunpack.c.l.b16 %v590
  %v1192 = vunpack.c.h.b16 %v590
  %v1193 = vunpack.c.l.b16 %v591
  %v1194 = vunpack.c.h.b16 %v591
  %v1195 = vunpack.c.l.b16 %v592
  %v1196 = vunpack.c.h.b16 %v592
  %v1197 = vunpack.c.l.b16 %v593
  %v1198 = vunpack.c.h.b16 %v593
  %v1199 = vunpack.c.l.b16 %v594
  %v1200 = vunpack.c.h.b16 %v594
  %v1201 = vunpack.c.l.b16 %v595
  %v1202 = vunpack.c.h.b16 %v595
  %v1203 = vunpack.c.l.b16 %v596
  %v1204 = vunpack.c.h.b16 %v596
  %v1205 = vunpack.c.l.b16 %v597
  %v1206 = vunpack.c.h.b16 %v597
  %v1207 = vunpack.c.l.b16 %v598
  %v1208 = vunpack.c.h.b16 %v598
  %v1209 = vunpack.c.l.b16 %v599
  %v1210 = vunpack.c.h.b16 %v599
  %v1211 = vunpack.c.l.b16 %v600
  %v1212 = vunpack.c.h.b16 %v600
  %v1213 = vunpack.c.l.b16 %v601
  %v1214 = vunpack.c.h.b16 %v601
  %v1215 = vunpack.c.l.b16 %v602
  %v1216 = vunpack.c.h.b16 %v602
  %v1217 = vunpack.c.l.b16 %v603
  %v1218 = vunpack.c.h.b16 %v603
  %v1219 = vunpack.c.l.b16 %v604
  %v1220 = vunpack.c.h.b16 %v604
  %v1221 = vunpack.c.l.b16 %v605
  %v1222 = vunpack.c.h.b16 %v605
  %v1223 = vunpack.c.l.b16 %v606
  %v1224 = vunpack.c.h.b16 %v606
  %v1225 = vunpack.c.l.b16 %v607
  %v1226 = vunpack.c.h.b16 %v607
  %v1227 = vunpack.c.l.b16 %v608
  %v1228 = vunpack.c.h.b16 %v608
  %v1229 = vunpack.c.l.b16 %v609
  %v1230 = vunpack.c.h.b16 %v609
  %v1231 = vunpack.c.l.b16 %v610
  %v1232 = vunpack.c.h.b16 %v610
  %v1233 = vunpack.c.l.b16 %v611
  %v1234 = vunpack.c.h.b16 %v611
  %v1235 = vunpack.c.l.b16 %v612
  %v1236 = vunpack.c.h.b16 %v612
  %v1237 = vunpack.c.l.b16 %v613
  %v1238 = vunpack.c.h.b16 %v613
  %v1239 = vunpack.c.l.b16 %v614
  %v1240 = vunpack.c.h.b16 %v614
  %v1241 = vunpack.c.l.b16 %v615
  %v1242 = vunpack.c.h.b16 %v615
  %v1243 = vunpack.c.l.b16 %v616
  %v1244 = vunpack.c.h.b16 %v616
  %v1245 = vunpack.c.l.b16 %v617
  %v1246 = vunpack.c.h.b16 %v617
  %v1247 = vunpack.c.l.b16 %v618
  %v1248 = vunpack.c.h.b16 %v618
  %v1249 = vunpack.c.l.b16 %v619
  %v1250 = vunpack.c.h.b16 %v619
  %v1251 = vunpack.c.l.b16 %v620
  %v1252 = vunpack.c.h.b16 %v620
  %v1253 = vunpack.c.l.b16 %v621
  %v1254 = vunpack.c.h.b16 %v621
  %v1255 = vunpack.c.l.b16 %v622
  %v1256 = vunpack.c.h.b16 %v622
  %v1257 = vunpack.c.l.b16 %v623
  %v1258 = vunpack.c.h.b16 %v623
  %v1259 = vunpack.c.l.b16 %v624
  %v1260 = vunpack.c.h.b16 %v624
  %v1261 = vunpack.c.l.b16 %v625
  %v1262 = vunpack.c.h.b16 %v625
  %v1263 = vunpack.c.l.b16 %v626
  %v1264 = vunpack.c.h.b16 %v626
  %v1265 = vunpack.c.l.b16 %v627
  %v1266 = vunpack.c.h.b16 %v627
  %v1267 = vunpack.c.l.b16 %v628
  %v1268 = vunpack.c.h.b16 %v628
  %v1269 = vunpack.c.l.b16 %v629
  %v1270 = vunpack.c.h.b16 %v629
  %v1271 = vunpack.c.l.b16 %v630
  %v1272 = vunpack.c.h.b16 %v630
  %v1273 = vunpack.c.l.b16 %v631
  %v1274 = vunpack.c.h.b16 %v631
  %v1275 = vunpack.c.l.b16 %v632
  %v1276 = vunpack.c.h.b16 %v632
  %v1277 = vunpack.c.l.b16 %v633
  %v1278 = vunpack.c.h.b16 %v633
  %v1279 = vunpack.c.l.b16 %v634
  %v1280 = vunpack.c.h.b16 %v634
  %v1281 = vunpack.c.l.b16 %v635
  %v1282 = vunpack.c.h.b16 %v635
  %v1283 = vunpack.c.l.b16 %v636
  %v1284 = vunpack.c.h.b16 %v636
  %v1285 = vunpack.c.l.b16 %v637
  %v1286 = vunpack.c.h.b16 %v637
  %v1287 = vunpack.c.l.b16 %v638
  %v1288 = vunpack.c.h.b16 %v638
  %v1289 = vunpack.c.l.b16 %v639
  %v1290 = vunpack.c.h.b16 %v639
  %v1291 = vunpack.c.l.b16 %v640
  %v1292 = vunpack.c.h.b16 %v640
  %v1293 = vunpack.c.l.b16 %v641
  %v1294 = vunpack.c.h.b16 %v641
  %v1295 = vunpack.c.l.b16 %v642
  %v1296 = vunpack.c.h.b16 %v642
  %v1297 = vunpack.c.l.b16 %v643
  %v1298 = vunpack.c.h.b16 %v643
  %v1299 = vunpack.c.l.b16 %v644
  %v1300 = vunpack.c.h.b16 %v644
  %v1301 = vunpack.c.l.b16 %v645
  %v1302 = vunpack.c.h.b16 %v645
  %v1303 = vunpack.c.l.b16 %v646
  %v1304 = vunpack.c.h.b16 %v646
  %v1305 = vunpack.c.l.b16 %v647
  %v1306 = vunpack.c.h.b16 %v647
  %v1307 = vunpack.c.l.b16 %v648
  %v1308 = vunpack.c.h.b16 %v648
  %v1309 = vunpack.c.l.b16 %v649
  %v1310 = vunpack.c.h.b16 %v649
  %v1311 = vunpack.c.l.b16 %v650
  %v1312 = vunpack.c.h.b16 %v650
  %v1313 = vunpack.c.l.b16 %v651
  %v1314 = vunpack.c.h.b16 %v651
  %v1315 = vunpack.c.l.b16 %v652
  %v1316 = vunpack.c.h.b16 %v652
  %v1317 = vunpack.c.l.b16 %v653
  %v1318 = vunpack.c.h.b16 %v653
  %v1319 = vunpack.c.l.b16 %v654
  %v1320 = vunpack.c.h.b16 %v654
  %v1321 = vunpack.c.l.b16 %v655
  %v1322 = vunpack.c.h.b16 %v655
  %v1323 = vunpack.c.l.b16 %v656
  %v1324 = vunpack.c.h.b16 %v656
  %v1325 = vunpack.c.l.b16 %v657
  %v1326 = vunpack.c.h.b16 %v657
  %v1327 = vunpack.c.l.b16 %v658
  %v1328 = vunpack.c.h.b16 %v658
  %v1329 = vunpack.c.l.b16 %v659
  %v1330 = vunpack.c.h.b16 %v659
  %v1331 = vunpack.c.l.b16 %v660
  %v1332 = vunpack.c.h.b16 %v660
  %v1333 = vunpack.c.l.b16 %v661
  %v1334 = vunpack.c.h.b16 %v661
  %v1335 = vunpack.c.l.b16 %v662
  %v1336 = vunpack.c.h.b16 %v662
  %v1337 = vunpack.c.l.b16 %v663
  %v1338 = vunpack.c.h.b16 %v663
  %v1339 = vunpack.c.l.b16 %v664
  %v1340 = vunpack.c.h.b16 %v664
  %v1341 = vunpack.c.l.b16 %v665
  %v1342 = vunpack.c.h.b16 %v665
  %v1343 = vunpack.c.l.b16 %v666
  %v1344 = vunpack.c.h.b16 %v666
  %v1345 = vunpack.c.l.b16 %v667
  %v1346 = vunpack.c.h.b16 %v667
  %v1347 = vunpack.c.l.b16 %v668
  %v1348 = vunpack.c.h.b16 %v668
  %v1349 = vunpack.c.l.b16 %v669
  %v1350 = vunpack.c.h.b16 %v669
  %v1351 = vunpack.c.l.b16 %v670
  %v1352 = vunpack.c.h.b16 %v670
  %v1353 = vunpack.c.l.b16 %v671
  %v1354 = vunpack.c.h.b16 %v671
  %v1355 = vunpack.c.l.b16 %v672
  %v1356 = vunpack.c.h.b16 %v672
  %v1357 = vunpack.c.l.b16 %v673
  %v1358 = vunpack.c.h.b16 %v673
  %v1359 = vunpack.c.l.b16 %v674
  %v1360 = vunpack.c.h.b16 %v674
  %v1361 = vunpack.c.l.b16 %v675
  %v1362 = vunpack.c.h.b16 %v675
  %v1363 = vunpack.c.l.b16 %v676
  %v1364 = vunpack.c.h.b16 %v676
  %v1365 = vunpack.c.l.b16 %v677
  %v1366 = vunpack.c.h.b16 %v677
  %v1367 = vunpack.c.l.b16 %v678
  %v1368 = vunpack.c.h.b16 %v678
  %v1369 = vunpack.c.l.b16 %v679
  %v1370 = vunpack.c.h.b16 %v679
  %v1371 = vunpack.c.l.b16 %v680
  %v1372 = vunpack.c.h.b16 %v680
  %v1373 = vunpack.c.l.b16 %v681
  %v1374 = vunpack.c.h.b16 %v681
  %v1375 = vunpack.c.l.b16 %v682
  %v1376 = vunpack.c.h.b16 %v682
  %v1377 = vunpack.c.l.b16 %v683
  %v1378 = vunpack.c.h.b16 %v683
  %v1379 = vunpack.c.l.b16 %v684
  %v1380 = vunpack.c.h.b16 %v684
  %v1381 = vunpack.c.l.b16 %v685
  %v1382 = vunpack.c.h.b16 %v685
  %v1383 = vunpack.c.l.b16 %v686
  %v1384 = vunpack.c.h.b16 %v686
  %v1385 = vunpack.c.l.b16 %v687
  %v1386 = vunpack.c.h.b16 %v687
  %v1387 = vunpack.c.l.b16 %v688
  %v1388 = vunpack.c.h.b16 %v688
  %v1389 = vunpack.c.l.b16 %v689
  %v1390 = vunpack.c.h.b16 %v689
  %v1391 = vunpack.c.l.b16 %v690
  %v1392 = vunpack.c.h.b16 %v690
  %v1393 = vunpack.c.l.b16 %v691
  %v1394 = vunpack.c.h.b16 %v691
  %v1395 = vunpack.c.l.b16 %v692
  %v1396 = vunpack.c.h.b16 %v692
  %v1397 = vunpack.c.l.b16 %v693
  %v1398 = vunpack.c.h.b16 %v693
  %v1399 = vunpack.c.l.b16 %v694
  %v1400 = vunpack.c.h.b16 %v694
  %v1401 = vunpack.c.l.b16 %v695
  %v1402 = vunpack.c.h.b16 %v695
  %v1403 = vunpack.c.l.b16 %v696
  %v1404 = vunpack.c.h.b16 %v696
  %v1405 = vunpack.c.l.b16 %v697
  %v1406 = vunpack.c.h.b16 %v697
  %v1407 = vunpack.c.l.b16 %v698
  %v1408 = vunpack.c.h.b16 %v698
  %v1409 = vunpack.c.l.b16 %v699
  %v1410 = vunpack.c.h.b16 %v699
  %v1411 = vunpack.c.l.b16 %v700
  %v1412 = vunpack.c.h.b16 %v700
  %v1413 = vunpack.c.l.b16 %v701
  %v1414 = vunpack.c.h.b16 %v701
  %v1415 = vunpack.c.l.b16 %v702
  %v1416 = vunpack.c.h.b16 %v702
  %v1417 = vunpack.c.l.b16 %v703
  %v1418 = vunpack.c.h.b16 %v703
  %v1419 = vunpack.c.l.b16 %v704
  %v1420 = vunpack.c.h.b16 %v704
  %v1421 = vunpack.c.l.b16 %v705
  %v1422 = vunpack.c.h.b16 %v705
  %v1423 = vunpack.c.l.b16 %v706
  %v1424 = vunpack.c.h.b16 %v706
  %v1425 = vunpack.c.l.b16 %v707
  %v1426 = vunpack.c.h.b16 %v707
  %v1427 = vunpack.c.l.b16 %v708
  %v1428 = vunpack.c.h.b16 %v708
  %v1429 = vunpack.c.l.b16 %v709
  %v1430 = vunpack.c.h.b16 %v709
  %v1431 = vunpack.c.l.b16 %v710
  %v1432 = vunpack.c.h.b16 %v710
  %v1433 = vunpack.c.l.b16 %v711
  %v1434 = vunpack.c.h.b16 %v711
  %v1435 = vunpack.c.l.b16 %v712
  %v1436 = vunpack.c.h.b16 %v712
  %v1437 = vunpack.c.l.b16 %v713
  %v1438 = vunpack.c.h.b16 %v713
  %v1439 = vunpack.c.l.b16 %v714
  %v1440 = vunpack.c.h.b16 %v714
  %v1441 = vunpack.c.l.b16 %v715
  %v1442 = vunpack.c.h.b16 %v715
  %v1443 = vunpack.c.l.b16 %v716
  %v1444 = vunpack.c.h.b16 %v716
  %v1445 = vunpack.c.l.b16 %v717
  %v1446 = vunpack.c.h.b16 %v717
  %v1447 = vunpack.c.l.b16 %v718
  %v1448 = vunpack.c.h.b16 %v718
  %v1449 = vunpack.c.l.b16 %v719
  %v1450 = vunpack.c.h.b16 %v719
  %v1451 = vunpack.c.l.b16 %v720
  %v1452 = vunpack.c.h.b16 %v720
  %v1453 = vunpack.c.l.b16 %v721
  %v1454 = vunpack.c.h.b16 %v721
  %v1455 = vunpack.c.l.b16 %v722
  %v1456 = vunpack.c.h.b16 %v722
  %v1457 = vunpack.c.l.b16 %v723
  %v1458 = vunpack.c.h.b16 %v723
  %v1459 = vunpack.c.l.b16 %v724
  %v1460 = vunpack.c.h.b16 %v724
  %v1461 = vunpack.c.l.b16 %v725
  %v1462 = vunpack.c.h.b16 %v725
  %v1463 = vunpack.c.l.b16 %v726
  %v1464 = vunpack.c.h.b16 %v726
  %v1465 = vunpack.c.l.b16 %v727
  %v1466 = vunpack.c.h.b16 %v727
  %v1467 = vunpack.c.l.b16 %v728
  %v1468 = vunpack.c.h.b16 %v728
  %v1469 = vunpack.c.l.b16 %v729
  %v1470 = vunpack.c.h.b16 %v729
  %v1471 = vunpack.c.l.b16 %v730
  %v1472 = vunpack.c.h.b16 %v730
  %v1473 = vunpack.c.l.b16 %v731
  %v1474 = vunpack.c.h.b16 %v731
  %v1475 = vunpack.c.l.b16 %v732
  %v1476 = vunpack.c.h.b16 %v732
  %v1477 = vunpack.c.l.b16 %v733
  %v1478 = vunpack.c.h.b16 %v733
  %v1479 = vunpack.c.l.b16 %v734
  %v1480 = vunpack.c.h.b16 %v734
  %v1481 = vunpack.c.l.b16 %v735
  %v1482 = vunpack.c.h.b16 %v735
  %v1483 = vunpack.c.l.b16 %v736
  %v1484 = vunpack.c.h.b16 %v736
  %v1485 = vunpack.c.l.b16 %v737
  %v1486 = vunpack.c.h.b16 %v737
  %v1487 = vunpack.c.l.b16 %v738
  %v1488 = vunpack.c.h.b16 %v738
  %v1489 = vunpack.c.l.b16 %v739
  %v1490 = vunpack.c.h.b16 %v739
  %v1491 = vunpack.c.l.b16 %v740
  %v1492 = vunpack.c.h.b16 %v740
  %v1493 = vunpack.c.l.b16 %v741
  %v1494 = vunpack.c.h.b16 %v741
  %v1495 = vunpack.c.l.b16 %v742
  %v1496 = vunpack.c.h.b16 %v742
  %v1497 = vunpack.c.l.b16 %v743
  %v1498 = vunpack.c.h.b16 %v743
  %v1499 = vunpack.c.l.b16 %v744
  %v1500 = vunpack.c.h.b16 %v744
  %v1501 = vunpack.c.l.b16 %v745
  %v1502 = vunpack.c.h.b16 %v745
  %v1503 = vunpack.c.l.b16 %v746
  %v1504 = vunpack.c.h.b16 %v746
  %v1505 = vunpack.c.l.b16 %v747
  %v1506 = vunpack.c.h.b16 %v747
  %v1507 = vunpack.c.l.b16 %v748
  %v1508 = vunpack.c.h.b16 %v748
  %v1509 = vunpack.c.l.b16 %v749
  %v1510 = vunpack.c.h.b16 %v749
  %v1511 = vunpack.c.l.b16 %v750
  %v1512 = vunpack.c.h.b16 %v750
  %v1513 = vunpack.c.l.b16 %v751
  %v1514 = vunpack.c.h.b16 %v751
  %v1515 = vunpack.c.l.b16 %v752
  %v1516 = vunpack.c.h.b16 %v752
  %v1517 = vunpack.c.l.b16 %v753
  %v1518 = vunpack.c.h.b16 %v753
  %v1519 = vunpack.c.l.b16 %v754
  %v1520 = vunpack.c.h.b16 %v754
  %v1521 = vunpack.c.l.b16 %v755
  %v1522 = vunpack.c.h.b16 %v755
  %v1523 = vunpack.c.l.b16 %v756
  %v1524 = vunpack.c.h.b16 %v756
  %v1525 = vunpack.c.l.b16 %v757
  %v1526 = vunpack.c.h.b16 %v757
  %v1527 = vunpack.c.l.b16 %v758
  %v1528 = vunpack.c.h.b16 %v758
  %v1529 = vunpack.c.l.b16 %v759
  %v1530 = vunpack.c.h.b16 %v759
  %v1531 = vunpack.c.l.b16 %v760
  %v1532 = vunpack.c.h.b16 %v760
  %v1533 = vunpack.c.l.b16 %v761
  %v1534 = vunpack.c.h.b16 %v761
  %v1535 = vunpack.c.l.b16 %v762
  %v1536 = vunpack.c.h.b16 %v762
  %v1537 = vunpack.c.l.b16 %v763
  %v1538 = vunpack.c.h.b16 %v763
  %v1539 = vunpack.c.l.b16 %v764
  %v1540 = vunpack.c.h.b16 %v764
  %v1541 = vunpack.c.l.b16 %v765
  %v1542 = vunpack.c.h.b16 %v765
  %v1543 = vunpack.c.l.b16 %v766
  %v1544 = vunpack.c.h.b16 %v766
  %v1545 = vunpack.c.l.b16 %v767
  %v1546 = vunpack.c.h.b16 %v767
  %v1547 = vunpack.c.l.b16 %v768
  %v1548 = vunpack.c.h.b16 %v768
  %v1549 = vunpack.c.l.b16 %v769
  %v1550 = vunpack.c.h.b16 %v769
  %v1551 = vunpack.c.l.b16 %v770
  %v1552 = vunpack.c.h.b16 %v770
  %v1553 = vunpack.c.l.b16 %v771
  %v1554 = vunpack.c.h.b16 %v771
  %v1555 = vunpack.c.l.b16 %v772
  %v1556 = vunpack.c.h.b16 %v772
  %v1557 = vunpack.c.l.b16 %v773
  %v1558 = vunpack.c.h.b16 %v773
  %v1559 = vunpack.c.l.b16 %v774
  %v1560 = vunpack.c.h.b16 %v774
  %v1561 = vunpack.c.l.b16 %v775
  %v1562 = vunpack.c.h.b16 %v775
  %v1563 = vunpack.c.l.b16 %v776
  %v1564 = vunpack.c.h.b16 %v776
  %v1565 = vunpack.c.l.b16 %v777
  %v1566 = vunpack.c.h.b16 %v777
  %v1567 = vunpack.c.l.b16 %v778
  %v1568 = vunpack.c.h.b16 %v778
  %v1569 = vunpack.c.l.b16 %v779
  %v1570 = vunpack.c.h.b16 %v779
  %v1571 = vunpack.c.l.b16 %v780
  %v1572 = vunpack.c.h.b16 %v780
  %v1573 = vunpack.c.l.b16 %v781
  %v1574 = vunpack.c.h.b16 %v781
  %v1575 = vunpack.c.l.b16 %v782
  %v1576 = vunpack.c.h.b16 %v782
  %v1577 = vunpack.c.l.b16 %v783
  %v1578 = vunpack.c.h.b16 %v783
  %v1579 = vunpack.c.l.b16 %v784
  %v1580 = vunpack.c.h.b16 %v784
  %v1581 = vunpack.c.l.b16 %v785
  %v1582 = vunpack.c.h.b16 %v785
  %v1583 = vunpack.c.l.b16 %v786
  %v1584 = vunpack.c.h.b16 %v786
  %v1585 = vunpack.c.l.b16 %v787
  %v1586 = vunpack.c.h.b16 %v787
  %v1587 = vunpack.c.l.b16 %v788
  %v1588 = vunpack.c.h.b16 %v788
  %v1589 = vunpack.c.l.b16 %v789
  %v1590 = vunpack.c.h.b16 %v789
  %v1591 = vunpack.c.l.b16 %v790
  %v1592 = vunpack.c.h.b16 %v790
  %v1593 = vunpack.c.l.b16 %v791
  %v1594 = vunpack.c.h.b16 %v791
  %v1595 = vunpack.c.l.b16 %v792
  %v1596 = vunpack.c.h.b16 %v792
  %v1597 = vunpack.c.l.b16 %v793
  %v1598 = vunpack.c.h.b16 %v793
  %v1599 = vunpack.c.l.b16 %v794
  %v1600 = vunpack.c.h.b16 %v794
  %v1601 = vunpack.c.l.b16 %v795
  %v1602 = vunpack.c.h.b16 %v795
  %v1603 = vunpack.c.l.b16 %v796
  %v1604 = vunpack.c.h.b16 %v796
  %v1605 = vunpack.c.l.b16 %v797
  %v1606 = vunpack.c.h.b16 %v797
  %v1607 = vunpack.c.l.b16 %v798
  %v1608 = vunpack.c.h.b16 %v798
  %v1609 = vpack.c.b16 %v1105, %v1097
  %v1610 = vpack.c.b16 %v1106, %v1098
  %v1611 = vpack.c.b16 %v1107, %v1099
  %v1612 = vpack.c.b16 %v1108, %v1100
  %v1613 = vpack.c.b16 %v1109, %v1101
  %v1614 = vpack.c.b16 %v1110, %v1102
  %v1615 = vpack.c.b16 %v1111, %v1103
  %v1616 = vpack.c.b16 %v1112, %v1104
  %v1617 = vpack.c.b16 %v1121, %v1113
  %v1618 = vpack.c.b16 %v1122, %v1114
  %v1619 = vpack.c.b16 %v1123, %v1115
  %v1620 = vpack.c.b16 %v1124, %v1116
  %v1621 = vpack.c.b16 %v1125, %v1117
  %v1622 = vpack.c.b16 %v1126, %v1118
  %v1623 = vpack.c.b16 %v1127, %v1119
  %v1624 = vpack.c.b16 %v1128, %v1120
  %v1625 = vpack.c.b16 %v1137, %v1129
  %v1626 = vpack.c.b16 %v1138, %v1130
  %v1627 = vpack.c.b16 %v1139, %v1131
  %v1628 = vpack.c.b16 %v1140, %v1132
  %v1629 = vpack.c.b16 %v1141, %v1133
  %v1630 = vpack.c.b16 %v1142, %v1134
  %v1631 = vpack.c.b16 %v1143, %v1135
  %v1632 = vpack.c.b16 %v1144, %v1136
  %v1633 = vpack.c.b16 %v1153, %v1145
  %v1634 = vpack.c.b16 %v1154, %v1146
  %v1635 = vpack.c.b16 %v1155, %v1147
  %v1636 = vpack.c.b16 %v1156, %v1148
  %v1637 = vpack.c.b16 %v1157, %v1149
  %v1638 = vpack.c.b16 %v1158, %v1150
  %v1639 = vpack.c.b16 %v1159, %v1151
  %v1640 = vpack.c.b16 %v1160, %v1152
  %v1641 = vpack.c.b16 %v1169, %v1161
  %v1642 = vpack.c.b16 %v1170, %v1162
  %v1643 = vpack.c.b16 %v1171, %v1163
  %v1644 = vpack.c.b16 %v1172, %v1164
  %v1645 = vpack.c.b16 %v1173, %v1165
  %v1646 = vpack.c.b16 %v1174, %v1166
  %v1647 = vpack.c.b16 %v1175, %v1167
  %v1648 = vpack.c.b16 %v1176, %v1168
  %v1649 = vpack.c.b16 %v1185, %v1177
  %v1650 = vpack.c.b16 %v1186, %v1178
  %v1651 = vpack.c.b16 %v1187, %v1179
  %v1652 = vpack.c.b16 %v1188, %v1180
  %v1653 = vpack.c.b16 %v1189, %v1181
  %v1654 = vpack.c.b16 %v1190, %v1182
  %v1655 = vpack.c.b16 %v1191, %v1183
  %v1656 = vpack.c.b16 %v1192, %v1184
  %v1657 = vpack.c.b16 %v1201, %v1193
  %v1658 = vpack.c.b16 %v1202, %v1194
  %v1659 = vpack.c.b16 %v1203, %v1195
  %v1660 = vpack.c.b16 %v1204, %v1196
  %v1661 = vpack.c.b16 %v1205, %v1197
  %v1662 = vpack.c.b16 %v1206, %v1198
  %v1663 = vpack.c.b16 %v1207, %v1199
  %v1664 = vpack.c.b16 %v1208, %v1200
  %v1665 = vpack.c.b16 %v1217, %v1209
  %v1666 = vpack.c.b16 %v1218, %v1210
  %v1667 = vpack.c.b16 %v1219, %v1211
  %v1668 = vpack.c.b16 %v1220, %v1212
  %v1669 = vpack.c.b16 %v1221, %v1213
  %v1670 = vpack.c.b16 %v1222, %v1214
  %v1671 = vpack.c.b16 %v1223, %v1215
  %v1672 = vpack.c.b16 %v1224, %v1216
  %v1673 = vpack.c.b16 %v1233, %v1225
  %v1674 = vpack.c.b16 %v1234, %v1226
  %v1675 = vpack.c.b16 %v1235, %v1227
  %v1676 = vpack.c.b16 %v1236, %v1228
  %v1677 = vpack.c.b16 %v1237, %v1229
  %v1678 = vpack.c.b16 %v1238, %v1230
  %v1679 = vpack.c.b16 %v1239, %v1231
  %v1680 = vpack.c.b16 %v1240, %v1232
  %v1681 = vpack.c.b16 %v1249, %v1241
  %v1682 = vpack.c.b16 %v1250, %v1242
  %v1683 = vpack.c.b16 %v1251, %v1243
  %v1684 = vpack.c.b16 %v1252, %v1244
  %v1685 = vpack.c.b16 %v1253, %v1245
  %v1686 = vpack.c.b16 %v1254, %v1246
  %v1687 = vpack.c.b16 %v1255, %v1247
  %v1688 = vpack.c.b16 %v1256, %v1248
  %v1689 = vpack.c.b16 %v1265, %v1257
  %v1690 = vpack.c.b16 %v1266, %v1258
  %v1691 = vpack.c.b16 %v1267, %v1259
  %v1692 = vpack.c.b16 %v1268, %v1260
  %v1693 = vpack.c.b16 %v1269, %v1261
  %v1694 = vpack.c.b16 %v1270, %v1262
  %v1695 = vpack.c.b16 %v1271, %v1263
  %v1696 = vpack.c.b16 %v1272, %v1264
  %v1697 = vpack.c.b16 %v1281, %v1273
  %v1698 = vpack.c.b16 %v1282, %v1274
  %v1699 = vpack.c.b16 %v1283, %v1275
  %v1700 = vpack.c.b16 %v1284, %v1276
  %v1701 = vpack.c.b16 %v1285, %v1277
  %v1702 = vpack.c.b16 %v1286, %v1278
  %v1703 = vpack.c.b16 %v1287, %v1279
  %v1704 = vpack.c.b16 %v1288, %v1280
  %v1705 = vpack.c.b16 %v1297, %v1289
  %v1706 = vpack.c.b16 %v1298, %v1290
  %v1707 = vpack.c.b16 %v1299, %v1291
  %v1708 = vpack.c.b16 %v1300, %v1292
  %v1709 = vpack.c.b16 %v1301, %v1293
  %v1710 = vpack.c.b16 %v1302, %v1294
  %v1711 = vpack.c.b16 %v1303, %v1295
  %v1712 = vpack.c.b16 %v1304, %v1296
  %v1713 = vpack.c.b16 %v1313, %v1305
  %v1714 = vpack.c.b16 %v1314, %v1306
  %v1715 = vpack.c.b16 %v1315, %v1307
  %v1716 = vpack.c.b16 %v1316, %v1308
  %v1717 = vpack.c.b16 %v1317, %v1309
  %v1718 = vpack.c.b16 %v1318, %v1310
  %v1719 = vpack.c.b16 %v1319, %v1311
  %v1720 = vpack.c.b16 %v1320, %v1312
  %v1721 = vpack.c.b16 %v1329, %v1321
  %v1722 = vpack.c.b16 %v1330, %v1322
  %v1723 = vpack.c.b16 %v1331, %v1323
  %v1724 = vpack.c.b16 %v1332, %v1324
  %v1725 = vpack.c.b16 %v1333, %v1325
  %v1726 = vpack.c.b16 %v1334, %v1326
  %v1727 = vpack.c.b16 %v1335, %v1327
  %v1728 = vpack.c.b16 %v1336, %v1328
  %v1729 = vpack.c.b16 %v1345, %v1337
  %v1730 = vpack.c.b16 %v1346, %v1338
  %v1731 = vpack.c.b16 %v1347, %v1339
  %v1732 = vpack.c.b16 %v1348, %v1340
  %v1733 = vpack.c.b16 %v1349, %v1341
  %v1734 = vpack.c.b16 %v1350, %v1342
  %v1735 = vpack.c.b16 %v1351, %v1343
  %v1736 = vpack.c.b16 %v1352, %v1344
  %v1737 = vpack.c.b16 %v1361, %v1353
  %v1738 = vpack.c.b16 %v1362, %v1354
  %v1739 = vpack.c.b16 %v1363, %v1355
  %v1740 = vpack.c.b16 %v1364, %v1356
  %v1741 = vpack.c.b16 %v1365, %v1357
  %v1742 = vpack.c.b16 %v1366, %v1358
  %v1743 = vpack.c.b16 %v1367, %v1359
  %v1744 = vpack.c.b16 %v1368, %v1360
  %v1745 = vpack.c.b16 %v1377, %v1369
  %v1746 = vpack.c.b16 %v1378, %v1370
  %v1747 = vpack.c.b16 %v1379, %v1371
  %v1748 = vpack.c.b16 %v1380, %v1372
  %v1749 = vpack.c.b16 %v1381, %v1373
  %v1750 = vpack.c.b16 %v1382, %v1374
  %v1751 = vpack.c.b16 %v1383, %v1375
  %v1752 = vpack.c.b16 %v1384, %v1376
  %v1753 = vpack.c.b16 %v1393, %v1385
  %v1754 = vpack.c.b16 %v1394, %v1386
  %v1755 = vpack.c.b16 %v1395, %v1387
  %v1756 = vpack.c.b16 %v1396, %v1388
  %v1757 = vpack.c.b16 %v1397, %v1389
  %v1758 = vpack.c.b16 %v1398, %v1390
  %v1759 = vpack.c.b16 %v1399, %v1391
  %v1760 = vpack.c.b16 %v1400, %v1392
  %v1761 = vpack.c.b16 %v1409, %v1401
  %v1762 = vpack.c.b16 %v1410, %v1402
  %v1763 = vpack.c.b16 %v1411, %v1403
  %v1764 = vpack.c.b16 %v1412, %v1404
  %v1765 = vpack.c.b16 %v1413, %v1405
  %v1766 = vpack.c.b16 %v1414, %v1406
  %v1767 = vpack.c.b16 %v1415, %v1407
  %v1768 = vpack.c.b16 %v1416, %v1408
  %v1769 = vpack.c.b16 %v1425, %v1417
  %v1770 = vpack.c.b16 %v1426, %v1418
  %v1771 = vpack.c.b16 %v1427, %v1419
  %v1772 = vpack.c.b16 %v1428, %v1420
  %v1773 = vpack.c.b16 %v1429, %v1421
  %v1774 = vpack.c.b16 %v1430, %v1422
  %v1775 = vpack.c.b16 %v1431, %v1423
  %v1776 = vpack.c.b16 %v1432, %v1424
  %v1777 = vpack.c.b16 %v1441, %v1433
  %v1778 = vpack.c.b16 %v1442, %v1434
  %v1779 = vpack.c.b16 %v1443, %v1435
  %v1780 = vpack.c.b16 %v1444, %v1436
  %v1781 = vpack.c.b16 %v1445, %v1437
  %v1782 = vpack.c.b16 %v1446, %v1438
  %v1783 = vpack.c.b16 %v1447, %v1439
  %v1784 = vpack.c.b16 %v1448, %v1440
  %v1785 = vpack.c.b16 %v1457, %v1449
  %v1786 = vpack.c.b16 %v1458, %v1450
  %v1787 = vpack.c.b16 %v1459, %v1451
  %v1788 = vpack.c.b16 %v1460, %v1452
  %v1789 = vpack.c.b16 %v1461, %v1453
  %v1790 = vpack.c.b16 %v1462, %v1454
  %v1791 = vpack.c.b16 %v1463, %v1455
  %v1792 = vpack.c.b16 %v1464, %v1456
  %v1793 = vpack.c.b16 %v1473, %v1465
  %v1794 = vpack.c.b16 %v1474, %v1466
  %v1795 = vpack.c.b16 %v1475, %v1467
  %v1796 = vpack.c.b16 %v1476, %v1468
  %v1797 = vpack.c.b16 %v1477, %v1469
  %v1798 = vpack.c.b16 %v1478, %v1470
  %v1799 = vpack.c.b16 %v1479, %v1471
  %v1800 = vpack.c.b16 %v1480, %v1472
  %v1801 = vpack.c.b16 %v1489, %v1481
  %v1802 = vpack.c.b16 %v1490, %v1482
  %v1803 = vpack.c.b16 %v1491, %v1483
  %v1804 = vpack.c.b16 %v1492, %v1484
  %v1805 = vpack.c.b16 %v1493, %v1485
  %v1806 = vpack.c.b16 %v1494, %v1486
  %v1807 = vpack.c.b16 %v1495, %v1487
  %v1808 = vpack.c.b16 %v1496, %v1488
  %v1809 = vpack.c.b16 %v1505, %v1497
  %v1810 = vpack.c.b16 %v1506, %v1498
  %v1811 = vpack.c.b16 %v1507, %v1499
  %v1812 = vpack.c.b16 %v1508, %v1500
  %v1813 = vpack.c.b16 %v1509, %v1501
  %v1814 = vpack.c.b16 %v1510, %v1502
  %v1815 = vpack.c.b16 %v1511, %v1503
  %v1816 = vpack.c.b16 %v1512, %v1504
  %v1817 = vpack.c.b16 %v1521, %v1513
  %v1818 = vpack.c.b16 %v1522, %v1514
  %v1819 = vpack.c.b16 %v1523, %v1515
  %v1820 = vpack.c.b16 %v1524, %v1516
  %v1821 = vpack.c.b16 %v1525, %v1517
  %v1822 = vpack.c.b16 %v1526, %v1518
  %v1823 = vpack.c.b16 %v1527, %v1519
  %v1824 = vpack.c.b16 %v1528, %v1520
  %v1825 = vpack.c.b16 %v1537, %v1529
  %v1826 = vpack.c.b16 %v1538, %v1530
  %v1827 = vpack.c.b16 %v1539, %v1531
  %v1828 = vpack.c.b16 %v1540, %v1532
  %v1829 = vpack.c.b16 %v1541, %v1533
  %v1830 = vpack.c.b16 %v1542, %v1534
  %v1831 = vpack.c.b16 %v1543, %v1535
  %v1832 = vpack.c.b16 %v1544, %v1536
  %v1833 = vpack.c.b16 %v1553, %v1545
  %v1834 = vpack.c.b16 %v1554, %v1546
  %v1835 = vpack.c.b16 %v1555, %v1547
  %v1836 = vpack.c.b16 %v1556, %v1548
  %v1837 = vpack.c.b16 %v1557, %v1549
  %v1838 = vpack.c.b16 %v1558, %v1550
  %v1839 = vpack.c.b16 %v1559, %v1551
  %v1840 = vpack.c.b16 %v1560, %v1552
  %v1841 = vpack.c.b16 %v1569, %v1561
  %v1842 = vpack.c.b16 %v1570, %v1562
  %v1843 = vpack.c.b16 %v1571, %v1563
  %v1844 = vpack.c.b16 %v1572, %v1564
  %v1845 = vpack.c.b16 %v1573, %v1565
  %v1846 = vpack.c.b16 %v1574, %v1566
  %v1847 = vpack.c.b16 %v1575, %v1567
  %v1848 = vpack.c.b16 %v1576, %v1568
  %v1849 = vpack.c.b16 %v1585, %v1577
  %v1850 = vpack.c.b16 %v1586, %v1578
  %v1851 = vpack.c.b16 %v1587, %v1579
  %v1852 = vpack.c.b16 %v1588, %v1580
  %v1853 = vpack.c.b16 %v1589, %v1581
  %v1854 = vpack.c.b16 %v1590, %v1582
  %v1855 = vpack.c.b16 %v1591, %v1583
  %v1856 = vpack.c.b16 %v1592, %v1584
  %v1857 = vpack.c.b16 %v1601, %v1593
  %v1858 = vpack.c.b16 %v1602, %v1594
  %v1859 = vpack.c.b16 %v1603, %v1595
  %v1860 = vpack.c.b16 %v1604, %v1596
  %v1861 = vpack.c.b16 %v1605, %v1597
  %v1862 = vpack.c.b16 %v1606, %v1598
  %v1863 = vpack.c.b16 %v1607, %v1599
  %v1864 = vpack.c.b16 %v1608, %v1600
  %2121 = vmatprep.subr.bf16.mxu0 %v1610
  %2122 = vmatpush1.bf16.msra.mxu0 %v1609
  %2123 = vmatprep.subr.bf16.mxu0 %v1618
  %2124 = vmatpush1.bf16.msra.mxu0 %v1617
  %2125 = vmatprep.subr.bf16.mxu0 %v1626
  %2126 = vmatpush1.bf16.msra.mxu0 %v1625
  %2127 = vmatprep.subr.bf16.mxu0 %v1634
  %2128 = vmatpush1.bf16.msra.mxu0 %v1633
  %2129 = vmatprep.subr.bf16.mxu0 %v1642
  %2130 = vmatpush1.bf16.msra.mxu0 %v1641
  %2131 = vmatprep.subr.bf16.mxu0 %v1650
  %2132 = vmatpush1.bf16.msra.mxu0 %v1649
  %2133 = vmatprep.subr.bf16.mxu0 %v1658
  %2134 = vmatpush1.bf16.msra.mxu0 %v1657
  %2135 = vmatprep.subr.bf16.mxu0 %v1666
  %2136 = vmatpush1.bf16.msra.mxu0 %v1665
  %2137 = vmatprep.subr.bf16.mxu0 %v1674
  %2138 = vmatpush1.bf16.msra.mxu0 %v1673
  %2139 = vmatprep.subr.bf16.mxu0 %v1682
  %2140 = vmatpush1.bf16.msra.mxu0 %v1681
  %2141 = vmatprep.subr.bf16.mxu0 %v1690
  %2142 = vmatpush1.bf16.msra.mxu0 %v1689
  %2143 = vmatprep.subr.bf16.mxu0 %v1698
  %2144 = vmatpush1.bf16.msra.mxu0 %v1697
  %2145 = vmatprep.subr.bf16.mxu0 %v1706
  %2146 = vmatpush1.bf16.msra.mxu0 %v1705
  %2147 = vmatprep.subr.bf16.mxu0 %v1714
  %2148 = vmatpush1.bf16.msra.mxu0 %v1713
  %2149 = vmatprep.subr.bf16.mxu0 %v1722
  %2150 = vmatpush1.bf16.msra.mxu0 %v1721
  %2151 = vmatprep.subr.bf16.mxu0 %v1730
  %2152 = vmatpush1.bf16.msra.mxu0 %v1729
  %2153 = vmatprep.mubr.bf16.mxu0 %v540
  %2154 = vmatmul.mubr.bf16.gmra.mrb[0].mxu0 %v539
  %v2155 = vpop.f32.mrb[0].mxu0
  %v2156 = vadd.f32 %v804, %v2155
  %v2157 = vpop.f32.mrb[0].mxu0
  %v2158 = vadd.f32 %v808, %v2157
  %v2159 = vpop.f32.mrb[0].mxu0
  %v2160 = vadd.f32 %v804, %v2159
  %v2161 = vpop.f32.mrb[0].mxu0
  %v2162 = vadd.f32 %v808, %v2161
  %2163 = vdwg.mxu0
  %2164 = vmatprep.subr.bf16.mxu0 %v1738
  %2165 = vmatpush1.bf16.msra.mxu0 %v1737
  %2166 = vmatprep.subr.bf16.mxu0 %v1746
  %2167 = vmatpush1.bf16.msra.mxu0 %v1745
  %2168 = vmatprep.subr.bf16.mxu0 %v1754
  %2169 = vmatpush1.bf16.msra.mxu0 %v1753
  %2170 = vmatprep.subr.bf16.mxu0 %v1762
  %2171 = vmatpush1.bf16.msra.mxu0 %v1761
  %2172 = vmatprep.subr.bf16.mxu0 %v1770
  %2173 = vmatpush1.bf16.msra.mxu0 %v1769
  %2174 = vmatprep.subr.bf16.mxu0 %v1778
  %2175 = vmatpush1.bf16.msra.mxu0 %v1777
  %2176 = vmatprep.subr.bf16.mxu0 %v1786
  %2177 = vmatpush1.bf16.msra.mxu0 %v1785
  %2178 = vmatprep.subr.bf16.mxu0 %v1794
  %2179 = vmatpush1.bf16.msra.mxu0 %v1793
  %2180 = vmatprep.subr.bf16.mxu0 %v1802
  %2181 = vmatpush1.bf16.msra.mxu0 %v1801
  %2182 = vmatprep.subr.bf16.mxu0 %v1810
  %2183 = vmatpush1.bf16.msra.mxu0 %v1809
  %2184 = vmatprep.subr.bf16.mxu0 %v1818
  %2185 = vmatpush1.bf16.msra.mxu0 %v1817
  %2186 = vmatprep.subr.bf16.mxu0 %v1826
  %2187 = vmatpush1.bf16.msra.mxu0 %v1825
  %2188 = vmatprep.subr.bf16.mxu0 %v1834
  %2189 = vmatpush1.bf16.msra.mxu0 %v1833
  %2190 = vmatprep.subr.bf16.mxu0 %v1842
  %2191 = vmatpush1.bf16.msra.mxu0 %v1841
  %2192 = vmatprep.subr.bf16.mxu0 %v1850
  %2193 = vmatpush1.bf16.msra.mxu0 %v1849
  %2194 = vmatprep.subr.bf16.mxu0 %v1858
  %2195 = vmatpush1.bf16.msra.mxu0 %v1857
  %2196 = vmatprep.mubr.bf16.mxu0 %v542
  %2197 = vmatmul.mubr.bf16.gmra.mrb[0].mxu0 %v541
  %v2198 = vpop.f32.mrb[0].mxu0
  %v2199 = vadd.f32 %v2156, %v2198
  %v2200 = vpop.f32.mrb[0].mxu0
  %v2201 = vadd.f32 %v2158, %v2200
  %v2202 = vpop.f32.mrb[0].mxu0
  %v2203 = vadd.f32 %v2160, %v2202
  %v2204 = vpop.f32.mrb[0].mxu0
  %v2205 = vadd.f32 %v2162, %v2204
  %2206 = vdwg.mxu0
  %2207 = vmatprep.subr.bf16.mxu0 %v1612
  %2208 = vmatpush1.bf16.msra.mxu0 %v1611
  %2209 = vmatprep.subr.bf16.mxu0 %v1620
  %2210 = vmatpush1.bf16.msra.mxu0 %v1619
  %2211 = vmatprep.subr.bf16.mxu0 %v1628
  %2212 = vmatpush1.bf16.msra.mxu0 %v1627
  %2213 = vmatprep.subr.bf16.mxu0 %v1636
  %2214 = vmatpush1.bf16.msra.mxu0 %v1635
  %2215 = vmatprep.subr.bf16.mxu0 %v1644
  %2216 = vmatpush1.bf16.msra.mxu0 %v1643
  %2217 = vmatprep.subr.bf16.mxu0 %v1652
  %2218 = vmatpush1.bf16.msra.mxu0 %v1651
  %2219 = vmatprep.subr.bf16.mxu0 %v1660
  %2220 = vmatpush1.bf16.msra.mxu0 %v1659
  %2221 = vmatprep.subr.bf16.mxu0 %v1668
  %2222 = vmatpush1.bf16.msra.mxu0 %v1667
  %2223 = vmatprep.subr.bf16.mxu0 %v1676
  %2224 = vmatpush1.bf16.msra.mxu0 %v1675
  %2225 = vmatprep.subr.bf16.mxu0 %v1684
  %2226 = vmatpush1.bf16.msra.mxu0 %v1683
  %2227 = vmatprep.subr.bf16.mxu0 %v1692
  %2228 = vmatpush1.bf16.msra.mxu0 %v1691
  %2229 = vmatprep.subr.bf16.mxu0 %v1700
  %2230 = vmatpush1.bf16.msra.mxu0 %v1699
  %2231 = vmatprep.subr.bf16.mxu0 %v1708
  %2232 = vmatpush1.bf16.msra.mxu0 %v1707
  %2233 = vmatprep.subr.bf16.mxu0 %v1716
  %2234 = vmatpush1.bf16.msra.mxu0 %v1715
  %2235 = vmatprep.subr.bf16.mxu0 %v1724
  %2236 = vmatpush1.bf16.msra.mxu0 %v1723
  %2237 = vmatprep.subr.bf16.mxu0 %v1732
  %2238 = vmatpush1.bf16.msra.mxu0 %v1731
  %2239 = vmatprep.mubr.bf16.mxu0 %v540
  %2240 = vmatmul.mubr.bf16.gmra.mrb[0].mxu0 %v539
  %v2241 = vpop.f32.mrb[0].mxu0
  %v2242 = vadd.f32 %v812, %v2241
  %v2243 = vpop.f32.mrb[0].mxu0
  %v2244 = vadd.f32 %v816, %v2243
  %v2245 = vpop.f32.mrb[0].mxu0
  %v2246 = vadd.f32 %v812, %v2245
  %v2247 = vpop.f32.mrb[0].mxu0
  %v2248 = vadd.f32 %v816, %v2247
  %2249 = vdwg.mxu0
  %2250 = vmatprep.subr.bf16.mxu0 %v1740
  %2251 = vmatpush1.bf16.msra.mxu0 %v1739
  %2252 = vmatprep.subr.bf16.mxu0 %v1748
  %2253 = vmatpush1.bf16.msra.mxu0 %v1747
  %2254 = vmatprep.subr.bf16.mxu0 %v1756
  %2255 = vmatpush1.bf16.msra.mxu0 %v1755
  %2256 = vmatprep.subr.bf16.mxu0 %v1764
  %2257 = vmatpush1.bf16.msra.mxu0 %v1763
  %2258 = vmatprep.subr.bf16.mxu0 %v1772
  %2259 = vmatpush1.bf16.msra.mxu0 %v1771
  %2260 = vmatprep.subr.bf16.mxu0 %v1780
  %2261 = vmatpush1.bf16.msra.mxu0 %v1779
  %2262 = vmatprep.subr.bf16.mxu0 %v1788
  %2263 = vmatpush1.bf16.msra.mxu0 %v1787
  %2264 = vmatprep.subr.bf16.mxu0 %v1796
  %2265 = vmatpush1.bf16.msra.mxu0 %v1795
  %2266 = vmatprep.subr.bf16.mxu0 %v1804
  %2267 = vmatpush1.bf16.msra.mxu0 %v1803
  %2268 = vmatprep.subr.bf16.mxu0 %v1812
  %2269 = vmatpush1.bf16.msra.mxu0 %v1811
  %2270 = vmatprep.subr.bf16.mxu0 %v1820
  %2271 = vmatpush1.bf16.msra.mxu0 %v1819
  %2272 = vmatprep.subr.bf16.mxu0 %v1828
  %2273 = vmatpush1.bf16.msra.mxu0 %v1827
  %2274 = vmatprep.subr.bf16.mxu0 %v1836
  %2275 = vmatpush1.bf16.msra.mxu0 %v1835
  %2276 = vmatprep.subr.bf16.mxu0 %v1844
  %2277 = vmatpush1.bf16.msra.mxu0 %v1843
  %2278 = vmatprep.subr.bf16.mxu0 %v1852
  %2279 = vmatpush1.bf16.msra.mxu0 %v1851
  %2280 = vmatprep.subr.bf16.mxu0 %v1860
  %2281 = vmatpush1.bf16.msra.mxu0 %v1859
  %2282 = vmatprep.mubr.bf16.mxu0 %v542
  %2283 = vmatmul.mubr.bf16.gmra.mrb[0].mxu0 %v541
  %v2284 = vpop.f32.mrb[0].mxu0
  %v2285 = vadd.f32 %v2242, %v2284
  %v2286 = vpop.f32.mrb[0].mxu0
  %v2287 = vadd.f32 %v2244, %v2286
  %v2288 = vpop.f32.mrb[0].mxu0
  %v2289 = vadd.f32 %v2246, %v2288
  %v2290 = vpop.f32.mrb[0].mxu0
  %v2291 = vadd.f32 %v2248, %v2290
  %2292 = vdwg.mxu0
  %2293 = vmatprep.subr.bf16.mxu0 %v1614
  %2294 = vmatpush1.bf16.msra.mxu0 %v1613
  %2295 = vmatprep.subr.bf16.mxu0 %v1622
  %2296 = vmatpush1.bf16.msra.mxu0 %v1621
  %2297 = vmatprep.subr.bf16.mxu0 %v1630
  %2298 = vmatpush1.bf16.msra.mxu0 %v1629
  %2299 = vmatprep.subr.bf16.mxu0 %v1638
  %2300 = vmatpush1.bf16.msra.mxu0 %v1637
  %2301 = vmatprep.subr.bf16.mxu0 %v1646
  %2302 = vmatpush1.bf16.msra.mxu0 %v1645
  %2303 = vmatprep.subr.bf16.mxu0 %v1654
  %2304 = vmatpush1.bf16.msra.mxu0 %v1653
  %2305 = vmatprep.subr.bf16.mxu0 %v1662
  %2306 = vmatpush1.bf16.msra.mxu0 %v1661
  %2307 = vmatprep.subr.bf16.mxu0 %v1670
  %2308 = vmatpush1.bf16.msra.mxu0 %v1669
  %2309 = vmatprep.subr.bf16.mxu0 %v1678
  %2310 = vmatpush1.bf16.msra.mxu0 %v1677
  %2311 = vmatprep.subr.bf16.mxu0 %v1686
  %2312 = vmatpush1.bf16.msra.mxu0 %v1685
  %2313 = vmatprep.subr.bf16.mxu0 %v1694
  %2314 = vmatpush1.bf16.msra.mxu0 %v1693
  %2315 = vmatprep.subr.bf16.mxu0 %v1702
  %2316 = vmatpush1.bf16.msra.mxu0 %v1701
  %2317 = vmatprep.subr.bf16.mxu0 %v1710
  %2318 = vmatpush1.bf16.msra.mxu0 %v1709
  %2319 = vmatprep.subr.bf16.mxu0 %v1718
  %2320 = vmatpush1.bf16.msra.mxu0 %v1717
  %2321 = vmatprep.subr.bf16.mxu0 %v1726
  %2322 = vmatpush1.bf16.msra.mxu0 %v1725
  %2323 = vmatprep.subr.bf16.mxu0 %v1734
  %2324 = vmatpush1.bf16.msra.mxu0 %v1733
  %2325 = vmatprep.mubr.bf16.mxu0 %v540
  %2326 = vmatmul.mubr.bf16.gmra.mrb[0].mxu0 %v539
  %v2327 = vpop.f32.mrb[0].mxu0
  %v2328 = vadd.f32 %v820, %v2327
  %v2329 = vpop.f32.mrb[0].mxu0
  %v2330 = vadd.f32 %v824, %v2329
  %v2331 = vpop.f32.mrb[0].mxu0
  %v2332 = vadd.f32 %v820, %v2331
  %v2333 = vpop.f32.mrb[0].mxu0
  %v2334 = vadd.f32 %v824, %v2333
  %2335 = vdwg.mxu0
  %2336 = vmatprep.subr.bf16.mxu0 %v1742
  %2337 = vmatpush1.bf16.msra.mxu0 %v1741
  %2338 = vmatprep.subr.bf16.mxu0 %v1750
  %2339 = vmatpush1.bf16.msra.mxu0 %v1749
  %2340 = vmatprep.subr.bf16.mxu0 %v1758
  %2341 = vmatpush1.bf16.msra.mxu0 %v1757
  %2342 = vmatprep.subr.bf16.mxu0 %v1766
  %2343 = vmatpush1.bf16.msra.mxu0 %v1765
  %2344 = vmatprep.subr.bf16.mxu0 %v1774
  %2345 = vmatpush1.bf16.msra.mxu0 %v1773
  %2346 = vmatprep.subr.bf16.mxu0 %v1782
  %2347 = vmatpush1.bf16.msra.mxu0 %v1781
  %2348 = vmatprep.subr.bf16.mxu0 %v1790
  %2349 = vmatpush1.bf16.msra.mxu0 %v1789
  %2350 = vmatprep.subr.bf16.mxu0 %v1798
  %2351 = vmatpush1.bf16.msra.mxu0 %v1797
  %2352 = vmatprep.subr.bf16.mxu0 %v1806
  %2353 = vmatpush1.bf16.msra.mxu0 %v1805
  %2354 = vmatprep.subr.bf16.mxu0 %v1814
  %2355 = vmatpush1.bf16.msra.mxu0 %v1813
  %2356 = vmatprep.subr.bf16.mxu0 %v1822
  %2357 = vmatpush1.bf16.msra.mxu0 %v1821
  %2358 = vmatprep.subr.bf16.mxu0 %v1830
  %2359 = vmatpush1.bf16.msra.mxu0 %v1829
  %2360 = vmatprep.subr.bf16.mxu0 %v1838
  %2361 = vmatpush1.bf16.msra.mxu0 %v1837
  %2362 = vmatprep.subr.bf16.mxu0 %v1846
  %2363 = vmatpush1.bf16.msra.mxu0 %v1845
  %2364 = vmatprep.subr.bf16.mxu0 %v1854
  %2365 = vmatpush1.bf16.msra.mxu0 %v1853
  %2366 = vmatprep.subr.bf16.mxu0 %v1862
  %2367 = vmatpush1.bf16.msra.mxu0 %v1861
  %2368 = vmatprep.mubr.bf16.mxu0 %v542
  %2369 = vmatmul.mubr.bf16.gmra.mrb[0].mxu0 %v541
  %v2370 = vpop.f32.mrb[0].mxu0
  %v2371 = vadd.f32 %v2328, %v2370
  %v2372 = vpop.f32.mrb[0].mxu0
  %v2373 = vadd.f32 %v2330, %v2372
  %v2374 = vpop.f32.mrb[0].mxu0
  %v2375 = vadd.f32 %v2332, %v2374
  %v2376 = vpop.f32.mrb[0].mxu0
  %v2377 = vadd.f32 %v2334, %v2376
  %2378 = vdwg.mxu0
  %2379 = vmatprep.subr.bf16.mxu0 %v1616
  %2380 = vmatpush1.bf16.msra.mxu0 %v1615
  %2381 = vmatprep.subr.bf16.mxu0 %v1624
  %2382 = vmatpush1.bf16.msra.mxu0 %v1623
  %2383 = vmatprep.subr.bf16.mxu0 %v1632
  %2384 = vmatpush1.bf16.msra.mxu0 %v1631
  %2385 = vmatprep.subr.bf16.mxu0 %v1640
  %2386 = vmatpush1.bf16.msra.mxu0 %v1639
  %2387 = vmatprep.subr.bf16.mxu0 %v1648
  %2388 = vmatpush1.bf16.msra.mxu0 %v1647
  %2389 = vmatprep.subr.bf16.mxu0 %v1656
  %2390 = vmatpush1.bf16.msra.mxu0 %v1655
  %2391 = vmatprep.subr.bf16.mxu0 %v1664
  %2392 = vmatpush1.bf16.msra.mxu0 %v1663
  %2393 = vmatprep.subr.bf16.mxu0 %v1672
  %2394 = vmatpush1.bf16.msra.mxu0 %v1671
  %2395 = vmatprep.subr.bf16.mxu0 %v1680
  %2396 = vmatpush1.bf16.msra.mxu0 %v1679
  %2397 = vmatprep.subr.bf16.mxu0 %v1688
  %2398 = vmatpush1.bf16.msra.mxu0 %v1687
  %2399 = vmatprep.subr.bf16.mxu0 %v1696
  %2400 = vmatpush1.bf16.msra.mxu0 %v1695
  %2401 = vmatprep.subr.bf16.mxu0 %v1704
  %2402 = vmatpush1.bf16.msra.mxu0 %v1703
  %2403 = vmatprep.subr.bf16.mxu0 %v1712
  %2404 = vmatpush1.bf16.msra.mxu0 %v1711
  %2405 = vmatprep.subr.bf16.mxu0 %v1720
  %2406 = vmatpush1.bf16.msra.mxu0 %v1719
  %2407 = vmatprep.subr.bf16.mxu0 %v1728
  %2408 = vmatpush1.bf16.msra.mxu0 %v1727
  %2409 = vmatprep.subr.bf16.mxu0 %v1736
  %2410 = vmatpush1.bf16.msra.mxu0 %v1735
  %2411 = vmatprep.mubr.bf16.mxu0 %v540
  %2412 = vmatmul.mubr.bf16.gmra.mrb[0].mxu0 %v539
  %v2413 = vpop.f32.mrb[0].mxu0
  %v2414 = vadd.f32 %v828, %v2413
  %v2415 = vpop.f32.mrb[0].mxu0
  %v2416 = vadd.f32 %v832, %v2415
  %v2417 = vpop.f32.mrb[0].mxu0
  %v2418 = vadd.f32 %v828, %v2417
  %v2419 = vpop.f32.mrb[0].mxu0
  %v2420 = vadd.f32 %v832, %v2419
  %2421 = vdwg.mxu0
  %2422 = vmatprep.subr.bf16.mxu0 %v1744
  %2423 = vmatpush1.bf16.msra.mxu0 %v1743
  %2424 = vmatprep.subr.bf16.mxu0 %v1752
  %2425 = vmatpush1.bf16.msra.mxu0 %v1751
  %2426 = vmatprep.subr.bf16.mxu0 %v1760
  %2427 = vmatpush1.bf16.msra.mxu0 %v1759
  %2428 = vmatprep.subr.bf16.mxu0 %v1768
  %2429 = vmatpush1.bf16.msra.mxu0 %v1767
  %2430 = vmatprep.subr.bf16.mxu0 %v1776
  %2431 = vmatpush1.bf16.msra.mxu0 %v1775
  %2432 = vmatprep.subr.bf16.mxu0 %v1784
  %2433 = vmatpush1.bf16.msra.mxu0 %v1783
  %2434 = vmatprep.subr.bf16.mxu0 %v1792
  %2435 = vmatpush1.bf16.msra.mxu0 %v1791
  %2436 = vmatprep.subr.bf16.mxu0 %v1800
  %2437 = vmatpush1.bf16.msra.mxu0 %v1799
  %2438 = vmatprep.subr.bf16.mxu0 %v1808
  %2439 = vmatpush1.bf16.msra.mxu0 %v1807
  %2440 = vmatprep.subr.bf16.mxu0 %v1816
  %2441 = vmatpush1.bf16.msra.mxu0 %v1815
  %2442 = vmatprep.subr.bf16.mxu0 %v1824
  %2443 = vmatpush1.bf16.msra.mxu0 %v1823
  %2444 = vmatprep.subr.bf16.mxu0 %v1832
  %2445 = vmatpush1.bf16.msra.mxu0 %v1831
  %2446 = vmatprep.subr.bf16.mxu0 %v1840
  %2447 = vmatpush1.bf16.msra.mxu0 %v1839
  %2448 = vmatprep.subr.bf16.mxu0 %v1848
  %2449 = vmatpush1.bf16.msra.mxu0 %v1847
  %2450 = vmatprep.subr.bf16.mxu0 %v1856
  %2451 = vmatpush1.bf16.msra.mxu0 %v1855
  %2452 = vmatprep.subr.bf16.mxu0 %v1864
  %2453 = vmatpush1.bf16.msra.mxu0 %v1863
  %2454 = vmatprep.mubr.bf16.mxu0 %v542
  %2455 = vmatmul.mubr.bf16.gmra.mrb[0].mxu0 %v541
  %v2456 = vpop.f32.mrb[0].mxu0
  %v2457 = vadd.f32 %v2414, %v2456
  %v2458 = vpop.f32.mrb[0].mxu0
  %v2459 = vadd.f32 %v2416, %v2458
  %v2460 = vpop.f32.mrb[0].mxu0
  %v2461 = vadd.f32 %v2418, %v2460
  %v2462 = vpop.f32.mrb[0].mxu0
  %v2463 = vadd.f32 %v2420, %v2462
  %2464 = vdwg.mxu0
  %v2465 = vtanh.pop %v2199
  %v2466 = vtanh.pop %v2201
  %v2467 = vtanh.pop %v2285
  %v2468 = vtanh.pop %v2287
  %v2469 = vtanh.pop %v2371
  %v2470 = vtanh.pop %v2373
  %v2471 = vtanh.pop %v2457
  %v2472 = vtanh.pop %v2459
  %v2473 = vtanh.pop %v2203
  %v2474 = vtanh.pop %v2205
  %v2475 = vtanh.pop %v2289
  %v2476 = vtanh.pop %v2291
  %v2477 = vtanh.pop %v2375
  %v2478 = vtanh.pop %v2377
  %v2479 = vtanh.pop %v2461
  %v2480 = vtanh.pop %v2463
  %v2481 = vmul.f32 %v2465, 0.5
  %v2482 = vmul.f32 %v2466, 0.5
  %v2483 = vmul.f32 %v2467, 0.5
  %v2484 = vmul.f32 %v2468, 0.5
  %v2485 = vmul.f32 %v2469, 0.5
  %v2486 = vmul.f32 %v2470, 0.5
  %v2487 = vmul.f32 %v2471, 0.5
  %v2488 = vmul.f32 %v2472, 0.5
  %v2489 = vmul.f32 %v2473, 0.5
  %v2490 = vmul.f32 %v2474, 0.5
  %v2491 = vmul.f32 %v2475, 0.5
  %v2492 = vmul.f32 %v2476, 0.5
  %v2493 = vmul.f32 %v2477, 0.5
  %v2494 = vmul.f32 %v2478, 0.5
  %v2495 = vmul.f32 %v2479, 0.5
  %v2496 = vmul.f32 %v2480, 0.5
  %v2497 = vadd.f32 %v2481, %v2199
  %v2498 = vadd.f32 %v2482, %v2201
  %v2499 = vadd.f32 %v2483, %v2285
  %v2500 = vadd.f32 %v2484, %v2287
  %v2501 = vadd.f32 %v2485, %v2371
  %v2502 = vadd.f32 %v2486, %v2373
  %v2503 = vadd.f32 %v2487, %v2457
  %v2504 = vadd.f32 %v2488, %v2459
  %v2505 = vadd.f32 %v2489, %v2203
  %v2506 = vadd.f32 %v2490, %v2205
  %v2507 = vadd.f32 %v2491, %v2289
  %v2508 = vadd.f32 %v2492, %v2291
  %v2509 = vadd.f32 %v2493, %v2375
  %v2510 = vadd.f32 %v2494, %v2377
  %v2511 = vadd.f32 %v2495, %v2461
  %v2512 = vadd.f32 %v2496, %v2463
  %v2513 = vpack.c.bf16 %v2505, %v2497
  %v2514 = vpack.c.bf16 %v2506, %v2498
  %v2515 = vpack.c.bf16 %v2507, %v2499
  %v2516 = vpack.c.bf16 %v2508, %v2500
  %v2517 = vpack.c.bf16 %v2509, %v2501
  %v2518 = vpack.c.bf16 %v2510, %v2502
  %v2519 = vpack.c.bf16 %v2511, %v2503
  %v2520 = vpack.c.bf16 %v2512, %v2504
  %v2521 = vld [vmem:[%s5] sm:$0xf]
  %v2522 = vld [vmem:[%s5 + $0x4] sm:$0xf]
  %v2523 = vld [vmem:[%s5 + $0x8] sm:$0xf]
  %v2524 = vld [vmem:[%s5 + $0xc] sm:$0xf]
  %v2525 = vld [vmem:[%s5 + $0x10] sm:$0xf]
  %v2526 = vld [vmem:[%s5 + $0x14] sm:$0xf]
  %v2527 = vld [vmem:[%s5 + $0x18] sm:$0xf]
  %v2528 = vld [vmem:[%s5 + $0x1c] sm:$0xf]
  %v2529 = vld [vmem:[%s5 + $0x20] sm:$0xf]
  %v2530 = vld [vmem:[%s5 + $0x24] sm:$0xf]
  %v2531 = vld [vmem:[%s5 + $0x28] sm:$0xf]
  %v2532 = vld [vmem:[%s5 + $0x2c] sm:$0xf]
  %v2533 = vld [vmem:[%s5 + $0x30] sm:$0xf]
  %v2534 = vld [vmem:[%s5 + $0x34] sm:$0xf]
  %v2535 = vld [vmem:[%s5 + $0x38] sm:$0xf]
  %v2536 = vld [vmem:[%s5 + $0x3c] sm:$0xf]
  %v2537 = vld [vmem:[%s5 + $0x40] sm:$0xf]
  %v2538 = vld [vmem:[%s5 + $0x44] sm:$0xf]
  %v2539 = vld [vmem:[%s5 + $0x48] sm:$0xf]
  %v2540 = vld [vmem:[%s5 + $0x4c] sm:$0xf]
  %v2541 = vld [vmem:[%s5 + $0x50] sm:$0xf]
  %v2542 = vld [vmem:[%s5 + $0x54] sm:$0xf]
  %v2543 = vld [vmem:[%s5 + $0x58] sm:$0xf]
  %v2544 = vld [vmem:[%s5 + $0x5c] sm:$0xf]
  %v2545 = vld [vmem:[%s5 + $0x60] sm:$0xf]
  %v2546 = vld [vmem:[%s5 + $0x64] sm:$0xf]
  %v2547 = vld [vmem:[%s5 + $0x68] sm:$0xf]
  %v2548 = vld [vmem:[%s5 + $0x6c] sm:$0xf]
  %v2549 = vld [vmem:[%s5 + $0x70] sm:$0xf]
  %v2550 = vld [vmem:[%s5 + $0x74] sm:$0xf]
  %v2551 = vld [vmem:[%s5 + $0x78] sm:$0xf]
  %v2552 = vld [vmem:[%s5 + $0x7c] sm:$0xf]
  %v2553 = vld [vmem:[%s5 + $0x80] sm:$0xf]
  %v2554 = vld [vmem:[%s5 + $0x84] sm:$0xf]
  %v2555 = vld [vmem:[%s5 + $0x88] sm:$0xf]
  %v2556 = vld [vmem:[%s5 + $0x8c] sm:$0xf]
  %v2557 = vld [vmem:[%s5 + $0x90] sm:$0xf]
  %v2558 = vld [vmem:[%s5 + $0x94] sm:$0xf]
  %v2559 = vld [vmem:[%s5 + $0x98] sm:$0xf]
  %v2560 = vld [vmem:[%s5 + $0x9c] sm:$0xf]
  %v2561 = vld [vmem:[%s5 + $0xa0] sm:$0xf]
  %v2562 = vld [vmem:[%s5 + $0xa4] sm:$0xf]
  %v2563 = vld [vmem:[%s5 + $0xa8] sm:$0xf]
  %v2564 = vld [vmem:[%s5 + $0xac] sm:$0xf]
  %v2565 = vld [vmem:[%s5 + $0xb0] sm:$0xf]
  %v2566 = vld [vmem:[%s5 + $0xb4] sm:$0xf]
  %v2567 = vld [vmem:[%s5 + $0xb8] sm:$0xf]
  %v2568 = vld [vmem:[%s5 + $0xbc] sm:$0xf]
  %v2569 = vld [vmem:[%s5 + $0xc0] sm:$0xf]
  %v2570 = vld [vmem:[%s5 + $0xc4] sm:$0xf]
  %v2571 = vld [vmem:[%s5 + $0xc8] sm:$0xf]
  %v2572 = vld [vmem:[%s5 + $0xcc] sm:$0xf]
  %v2573 = vld [vmem:[%s5 + $0xd0] sm:$0xf]
  %v2574 = vld [vmem:[%s5 + $0xd4] sm:$0xf]
  %v2575 = vld [vmem:[%s5 + $0xd8] sm:$0xf]
  %v2576 = vld [vmem:[%s5 + $0xdc] sm:$0xf]
  %v2577 = vld [vmem:[%s5 + $0xe0] sm:$0xf]
  %v2578 = vld [vmem:[%s5 + $0xe4] sm:$0xf]
  %v2579 = vld [vmem:[%s5 + $0xe8] sm:$0xf]
  %v2580 = vld [vmem:[%s5 + $0xec] sm:$0xf]
  %v2581 = vld [vmem:[%s5 + $0xf0] sm:$0xf]
  %v2582 = vld [vmem:[%s5 + $0xf4] sm:$0xf]
  %v2583 = vld [vmem:[%s5 + $0xf8] sm:$0xf]
  %v2584 = vld [vmem:[%s5 + $0xfc] sm:$0xf]
  %v2585 = vld [vmem:[%s5 + $0x100] sm:$0xf]
  %v2586 = vld [vmem:[%s5 + $0x104] sm:$0xf]
  %v2587 = vld [vmem:[%s5 + $0x108] sm:$0xf]
  %v2588 = vld [vmem:[%s5 + $0x10c] sm:$0xf]
  %v2589 = vld [vmem:[%s5 + $0x110] sm:$0xf]
  %v2590 = vld [vmem:[%s5 + $0x114] sm:$0xf]
  %v2591 = vld [vmem:[%s5 + $0x118] sm:$0xf]
  %v2592 = vld [vmem:[%s5 + $0x11c] sm:$0xf]
  %v2593 = vld [vmem:[%s5 + $0x120] sm:$0xf]
  %v2594 = vld [vmem:[%s5 + $0x124] sm:$0xf]
  %v2595 = vld [vmem:[%s5 + $0x128] sm:$0xf]
  %v2596 = vld [vmem:[%s5 + $0x12c] sm:$0xf]
  %v2597 = vld [vmem:[%s5 + $0x130] sm:$0xf]
  %v2598 = vld [vmem:[%s5 + $0x134] sm:$0xf]
  %v2599 = vld [vmem:[%s5 + $0x138] sm:$0xf]
  %v2600 = vld [vmem:[%s5 + $0x13c] sm:$0xf]
  %v2601 = vld [vmem:[%s5 + $0x140] sm:$0xf]
  %v2602 = vld [vmem:[%s5 + $0x144] sm:$0xf]
  %v2603 = vld [vmem:[%s5 + $0x148] sm:$0xf]
  %v2604 = vld [vmem:[%s5 + $0x14c] sm:$0xf]
  %v2605 = vld [vmem:[%s5 + $0x150] sm:$0xf]
  %v2606 = vld [vmem:[%s5 + $0x154] sm:$0xf]
  %v2607 = vld [vmem:[%s5 + $0x158] sm:$0xf]
  %v2608 = vld [vmem:[%s5 + $0x15c] sm:$0xf]
  %v2609 = vld [vmem:[%s5 + $0x160] sm:$0xf]
  %v2610 = vld [vmem:[%s5 + $0x164] sm:$0xf]
  %v2611 = vld [vmem:[%s5 + $0x168] sm:$0xf]
  %v2612 = vld [vmem:[%s5 + $0x16c] sm:$0xf]
  %v2613 = vld [vmem:[%s5 + $0x170] sm:$0xf]
  %v2614 = vld [vmem:[%s5 + $0x174] sm:$0xf]
  %v2615 = vld [vmem:[%s5 + $0x178] sm:$0xf]
  %v2616 = vld [vmem:[%s5 + $0x17c] sm:$0xf]
  %v2617 = vld [vmem:[%s5 + $0x180] sm:$0xf]
  %v2618 = vld [vmem:[%s5 + $0x184] sm:$0xf]
  %v2619 = vld [vmem:[%s5 + $0x188] sm:$0xf]
  %v2620 = vld [vmem:[%s5 + $0x18c] sm:$0xf]
  %v2621 = vld [vmem:[%s5 + $0x190] sm:$0xf]
  %v2622 = vld [vmem:[%s5 + $0x194] sm:$0xf]
  %v2623 = vld [vmem:[%s5 + $0x198] sm:$0xf]
  %v2624 = vld [vmem:[%s5 + $0x19c] sm:$0xf]
  %v2625 = vld [vmem:[%s5 + $0x1a0] sm:$0xf]
  %v2626 = vld [vmem:[%s5 + $0x1a4] sm:$0xf]
  %v2627 = vld [vmem:[%s5 + $0x1a8] sm:$0xf]
  %v2628 = vld [vmem:[%s5 + $0x1ac] sm:$0xf]
  %v2629 = vld [vmem:[%s5 + $0x1b0] sm:$0xf]
  %v2630 = vld [vmem:[%s5 + $0x1b4] sm:$0xf]
  %v2631 = vld [vmem:[%s5 + $0x1b8] sm:$0xf]
  %v2632 = vld [vmem:[%s5 + $0x1bc] sm:$0xf]
  %v2633 = vld [vmem:[%s5 + $0x1c0] sm:$0xf]
  %v2634 = vld [vmem:[%s5 + $0x1c4] sm:$0xf]
  %v2635 = vld [vmem:[%s5 + $0x1c8] sm:$0xf]
  %v2636 = vld [vmem:[%s5 + $0x1cc] sm:$0xf]
  %v2637 = vld [vmem:[%s5 + $0x1d0] sm:$0xf]
  %v2638 = vld [vmem:[%s5 + $0x1d4] sm:$0xf]
  %v2639 = vld [vmem:[%s5 + $0x1d8] sm:$0xf]
  %v2640 = vld [vmem:[%s5 + $0x1dc] sm:$0xf]
  %v2641 = vld [vmem:[%s5 + $0x1e0] sm:$0xf]
  %v2642 = vld [vmem:[%s5 + $0x1e4] sm:$0xf]
  %v2643 = vld [vmem:[%s5 + $0x1e8] sm:$0xf]
  %v2644 = vld [vmem:[%s5 + $0x1ec] sm:$0xf]
  %v2645 = vld [vmem:[%s5 + $0x1f0] sm:$0xf]
  %v2646 = vld [vmem:[%s5 + $0x1f4] sm:$0xf]
  %v2647 = vld [vmem:[%s5 + $0x1f8] sm:$0xf]
  %v2648 = vld [vmem:[%s5 + $0x1fc] sm:$0xf]
  %v2649 = vld [vmem:[%s6] sm:$0x1]
  %v2651 = vlaneseq
  %v2652 = vshrl.u32 %v2651, 7
  %v2653 = vsub.s32 0, %v2652
  %v2654 = vrot.slane %v2649, %v2653
  %v2784 = vunpack.c.l.b16 %v2521
  %v2785 = vunpack.c.l.b16 %v2522
  %v2786 = vunpack.c.l.b16 %v2523
  %v2787 = vunpack.c.l.b16 %v2524
  %v2788 = vunpack.c.l.b16 %v2525
  %v2789 = vunpack.c.l.b16 %v2526
  %v2790 = vunpack.c.l.b16 %v2527
  %v2791 = vunpack.c.l.b16 %v2528
  %v2792 = vunpack.c.l.b16 %v2529
  %v2793 = vunpack.c.l.b16 %v2530
  %v2794 = vunpack.c.l.b16 %v2531
  %v2795 = vunpack.c.l.b16 %v2532
  %v2796 = vunpack.c.l.b16 %v2533
  %v2797 = vunpack.c.l.b16 %v2534
  %v2798 = vunpack.c.l.b16 %v2535
  %v2799 = vunpack.c.l.b16 %v2536
  %v2800 = vunpack.c.l.b16 %v2537
  %v2801 = vunpack.c.l.b16 %v2538
  %v2802 = vunpack.c.l.b16 %v2539
  %v2803 = vunpack.c.l.b16 %v2540
  %v2804 = vunpack.c.l.b16 %v2541
  %v2805 = vunpack.c.l.b16 %v2542
  %v2806 = vunpack.c.l.b16 %v2543
  %v2807 = vunpack.c.l.b16 %v2544
  %v2808 = vunpack.c.l.b16 %v2545
  %v2809 = vunpack.c.l.b16 %v2546
  %v2810 = vunpack.c.l.b16 %v2547
  %v2811 = vunpack.c.l.b16 %v2548
  %v2812 = vunpack.c.l.b16 %v2549
  %v2813 = vunpack.c.l.b16 %v2550
  %v2814 = vunpack.c.l.b16 %v2551
  %v2815 = vunpack.c.l.b16 %v2552
  %v2816 = vunpack.c.l.b16 %v2553
  %v2817 = vunpack.c.l.b16 %v2554
  %v2818 = vunpack.c.l.b16 %v2555
  %v2819 = vunpack.c.l.b16 %v2556
  %v2820 = vunpack.c.l.b16 %v2557
  %v2821 = vunpack.c.l.b16 %v2558
  %v2822 = vunpack.c.l.b16 %v2559
  %v2823 = vunpack.c.l.b16 %v2560
  %v2824 = vunpack.c.l.b16 %v2561
  %v2825 = vunpack.c.l.b16 %v2562
  %v2826 = vunpack.c.l.b16 %v2563
  %v2827 = vunpack.c.l.b16 %v2564
  %v2828 = vunpack.c.l.b16 %v2565
  %v2829 = vunpack.c.l.b16 %v2566
  %v2830 = vunpack.c.l.b16 %v2567
  %v2831 = vunpack.c.l.b16 %v2568
  %v2832 = vunpack.c.l.b16 %v2569
  %v2833 = vunpack.c.l.b16 %v2570
  %v2834 = vunpack.c.l.b16 %v2571
  %v2835 = vunpack.c.l.b16 %v2572
  %v2836 = vunpack.c.l.b16 %v2573
  %v2837 = vunpack.c.l.b16 %v2574
  %v2838 = vunpack.c.l.b16 %v2575
  %v2839 = vunpack.c.l.b16 %v2576
  %v2840 = vunpack.c.l.b16 %v2577
  %v2841 = vunpack.c.l.b16 %v2578
  %v2842 = vunpack.c.l.b16 %v2579
  %v2843 = vunpack.c.l.b16 %v2580
  %v2844 = vunpack.c.l.b16 %v2581
  %v2845 = vunpack.c.l.b16 %v2582
  %v2846 = vunpack.c.l.b16 %v2583
  %v2847 = vunpack.c.l.b16 %v2584
  %v2848 = vunpack.c.l.b16 %v2585
  %v2849 = vunpack.c.l.b16 %v2586
  %v2850 = vunpack.c.l.b16 %v2587
  %v2851 = vunpack.c.l.b16 %v2588
  %v2852 = vunpack.c.l.b16 %v2589
  %v2853 = vunpack.c.l.b16 %v2590
  %v2854 = vunpack.c.l.b16 %v2591
  %v2855 = vunpack.c.l.b16 %v2592
  %v2856 = vunpack.c.l.b16 %v2593
  %v2857 = vunpack.c.l.b16 %v2594
  %v2858 = vunpack.c.l.b16 %v2595
  %v2859 = vunpack.c.l.b16 %v2596
  %v2860 = vunpack.c.l.b16 %v2597
  %v2861 = vunpack.c.l.b16 %v2598
  %v2862 = vunpack.c.l.b16 %v2599
  %v2863 = vunpack.c.l.b16 %v2600
  %v2864 = vunpack.c.l.b16 %v2601
  %v2865 = vunpack.c.l.b16 %v2602
  %v2866 = vunpack.c.l.b16 %v2603
  %v2867 = vunpack.c.l.b16 %v2604
  %v2868 = vunpack.c.l.b16 %v2605
  %v2869 = vunpack.c.l.b16 %v2606
  %v2870 = vunpack.c.l.b16 %v2607
  %v2871 = vunpack.c.l.b16 %v2608
  %v2872 = vunpack.c.l.b16 %v2609
  %v2873 = vunpack.c.l.b16 %v2610
  %v2874 = vunpack.c.l.b16 %v2611
  %v2875 = vunpack.c.l.b16 %v2612
  %v2876 = vunpack.c.l.b16 %v2613
  %v2877 = vunpack.c.l.b16 %v2614
  %v2878 = vunpack.c.l.b16 %v2615
  %v2879 = vunpack.c.l.b16 %v2616
  %v2880 = vunpack.c.l.b16 %v2617
  %v2881 = vunpack.c.l.b16 %v2618
  %v2882 = vunpack.c.l.b16 %v2619
  %v2883 = vunpack.c.l.b16 %v2620
  %v2884 = vunpack.c.l.b16 %v2621
  %v2885 = vunpack.c.l.b16 %v2622
  %v2886 = vunpack.c.l.b16 %v2623
  %v2887 = vunpack.c.l.b16 %v2624
  %v2888 = vunpack.c.l.b16 %v2625
  %v2889 = vunpack.c.l.b16 %v2626
  %v2890 = vunpack.c.l.b16 %v2627
  %v2891 = vunpack.c.l.b16 %v2628
  %v2892 = vunpack.c.l.b16 %v2629
  %v2893 = vunpack.c.l.b16 %v2630
  %v2894 = vunpack.c.l.b16 %v2631
  %v2895 = vunpack.c.l.b16 %v2632
  %v2896 = vunpack.c.l.b16 %v2633
  %v2897 = vunpack.c.l.b16 %v2634
  %v2898 = vunpack.c.l.b16 %v2635
  %v2899 = vunpack.c.l.b16 %v2636
  %v2900 = vunpack.c.l.b16 %v2637
  %v2901 = vunpack.c.l.b16 %v2638
  %v2902 = vunpack.c.l.b16 %v2639
  %v2903 = vunpack.c.l.b16 %v2640
  %v2904 = vunpack.c.l.b16 %v2641
  %v2905 = vunpack.c.l.b16 %v2642
  %v2906 = vunpack.c.l.b16 %v2643
  %v2907 = vunpack.c.l.b16 %v2644
  %v2908 = vunpack.c.l.b16 %v2645
  %v2909 = vunpack.c.l.b16 %v2646
  %v2910 = vunpack.c.l.b16 %v2647
  %v2911 = vunpack.c.l.b16 %v2648
  %v2912 = vpack.c.b16 %v2785, %v2784
  %v2913 = vpack.c.b16 %v2787, %v2786
  %v2914 = vpack.c.b16 %v2789, %v2788
  %v2915 = vpack.c.b16 %v2791, %v2790
  %v2916 = vpack.c.b16 %v2793, %v2792
  %v2917 = vpack.c.b16 %v2795, %v2794
  %v2918 = vpack.c.b16 %v2797, %v2796
  %v2919 = vpack.c.b16 %v2799, %v2798
  %v2920 = vpack.c.b16 %v2801, %v2800
  %v2921 = vpack.c.b16 %v2803, %v2802
  %v2922 = vpack.c.b16 %v2805, %v2804
  %v2923 = vpack.c.b16 %v2807, %v2806
  %v2924 = vpack.c.b16 %v2809, %v2808
  %v2925 = vpack.c.b16 %v2811, %v2810
  %v2926 = vpack.c.b16 %v2813, %v2812
  %v2927 = vpack.c.b16 %v2815, %v2814
  %v2928 = vpack.c.b16 %v2817, %v2816
  %v2929 = vpack.c.b16 %v2819, %v2818
  %v2930 = vpack.c.b16 %v2821, %v2820
  %v2931 = vpack.c.b16 %v2823, %v2822
  %v2932 = vpack.c.b16 %v2825, %v2824
  %v2933 = vpack.c.b16 %v2827, %v2826
  %v2934 = vpack.c.b16 %v2829, %v2828
  %v2935 = vpack.c.b16 %v2831, %v2830
  %v2936 = vpack.c.b16 %v2833, %v2832
  %v2937 = vpack.c.b16 %v2835, %v2834
  %v2938 = vpack.c.b16 %v2837, %v2836
  %v2939 = vpack.c.b16 %v2839, %v2838
  %v2940 = vpack.c.b16 %v2841, %v2840
  %v2941 = vpack.c.b16 %v2843, %v2842
  %v2942 = vpack.c.b16 %v2845, %v2844
  %v2943 = vpack.c.b16 %v2847, %v2846
  %v2944 = vpack.c.b16 %v2849, %v2848
  %v2945 = vpack.c.b16 %v2851, %v2850
  %v2946 = vpack.c.b16 %v2853, %v2852
  %v2947 = vpack.c.b16 %v2855, %v2854
  %v2948 = vpack.c.b16 %v2857, %v2856
  %v2949 = vpack.c.b16 %v2859, %v2858
  %v2950 = vpack.c.b16 %v2861, %v2860
  %v2951 = vpack.c.b16 %v2863, %v2862
  %v2952 = vpack.c.b16 %v2865, %v2864
  %v2953 = vpack.c.b16 %v2867, %v2866
  %v2954 = vpack.c.b16 %v2869, %v2868
  %v2955 = vpack.c.b16 %v2871, %v2870
  %v2956 = vpack.c.b16 %v2873, %v2872
  %v2957 = vpack.c.b16 %v2875, %v2874
  %v2958 = vpack.c.b16 %v2877, %v2876
  %v2959 = vpack.c.b16 %v2879, %v2878
  %v2960 = vpack.c.b16 %v2881, %v2880
  %v2961 = vpack.c.b16 %v2883, %v2882
  %v2962 = vpack.c.b16 %v2885, %v2884
  %v2963 = vpack.c.b16 %v2887, %v2886
  %v2964 = vpack.c.b16 %v2889, %v2888
  %v2965 = vpack.c.b16 %v2891, %v2890
  %v2966 = vpack.c.b16 %v2893, %v2892
  %v2967 = vpack.c.b16 %v2895, %v2894
  %v2968 = vpack.c.b16 %v2897, %v2896
  %v2969 = vpack.c.b16 %v2899, %v2898
  %v2970 = vpack.c.b16 %v2901, %v2900
  %v2971 = vpack.c.b16 %v2903, %v2902
  %v2972 = vpack.c.b16 %v2905, %v2904
  %v2973 = vpack.c.b16 %v2907, %v2906
  %v2974 = vpack.c.b16 %v2909, %v2908
  %v2975 = vpack.c.b16 %v2911, %v2910
  %3040 = vmatprep.subr.bf16.mxu0 0
  %3041 = vmatpush1.bf16.msra.mxu0 %v2912
  %3042 = vmatprep.subr.bf16.mxu0 0
  %3043 = vmatpush1.bf16.msra.mxu0 %v2913
  %3044 = vmatprep.subr.bf16.mxu0 0
  %3045 = vmatpush1.bf16.msra.mxu0 %v2914
  %3046 = vmatprep.subr.bf16.mxu0 0
  %3047 = vmatpush1.bf16.msra.mxu0 %v2915
  %3048 = vmatprep.subr.bf16.mxu0 0
  %3049 = vmatpush1.bf16.msra.mxu0 %v2916
  %3050 = vmatprep.subr.bf16.mxu0 0
  %3051 = vmatpush1.bf16.msra.mxu0 %v2917
  %3052 = vmatprep.subr.bf16.mxu0 0
  %3053 = vmatpush1.bf16.msra.mxu0 %v2918
  %3054 = vmatprep.subr.bf16.mxu0 0
  %3055 = vmatpush1.bf16.msra.mxu0 %v2919
  %3056 = vmatprep.subr.bf16.mxu0 0
  %3057 = vmatpush1.bf16.msra.mxu0 %v2920
  %3058 = vmatprep.subr.bf16.mxu0 0
  %3059 = vmatpush1.bf16.msra.mxu0 %v2921
  %3060 = vmatprep.subr.bf16.mxu0 0
  %3061 = vmatpush1.bf16.msra.mxu0 %v2922
  %3062 = vmatprep.subr.bf16.mxu0 0
  %3063 = vmatpush1.bf16.msra.mxu0 %v2923
  %3064 = vmatprep.subr.bf16.mxu0 0
  %3065 = vmatpush1.bf16.msra.mxu0 %v2924
  %3066 = vmatprep.subr.bf16.mxu0 0
  %3067 = vmatpush1.bf16.msra.mxu0 %v2925
  %3068 = vmatprep.subr.bf16.mxu0 0
  %3069 = vmatpush1.bf16.msra.mxu0 %v2926
  %3070 = vmatprep.subr.bf16.mxu0 0
  %3071 = vmatpush1.bf16.msra.mxu0 %v2927
  %3072 = vmatprep.mubr.bf16.mxu0 %v2514
  %3073 = vmatmul.mubr.bf16.gmra.mrb[0].mxu0 %v2513
  %v3074 = vpop.f32.mrb[0].mxu0
  %v3075 = vadd.f32 %v2654, %v3074
  %v3076 = vpop.f32.mrb[0].mxu0
  %v3077 = vpop.f32.mrb[0].mxu0
  %v3078 = vadd.f32 %v2654, %v3077
  %v3079 = vpop.f32.mrb[0].mxu0
  %3080 = vdwg.mxu0
  %3081 = vmatprep.subr.bf16.mxu0 0
  %3082 = vmatpush1.bf16.msra.mxu0 %v2928
  %3083 = vmatprep.subr.bf16.mxu0 0
  %3084 = vmatpush1.bf16.msra.mxu0 %v2929
  %3085 = vmatprep.subr.bf16.mxu0 0
  %3086 = vmatpush1.bf16.msra.mxu0 %v2930
  %3087 = vmatprep.subr.bf16.mxu0 0
  %3088 = vmatpush1.bf16.msra.mxu0 %v2931
  %3089 = vmatprep.subr.bf16.mxu0 0
  %3090 = vmatpush1.bf16.msra.mxu0 %v2932
  %3091 = vmatprep.subr.bf16.mxu0 0
  %3092 = vmatpush1.bf16.msra.mxu0 %v2933
  %3093 = vmatprep.subr.bf16.mxu0 0
  %3094 = vmatpush1.bf16.msra.mxu0 %v2934
  %3095 = vmatprep.subr.bf16.mxu0 0
  %3096 = vmatpush1.bf16.msra.mxu0 %v2935
  %3097 = vmatprep.subr.bf16.mxu0 0
  %3098 = vmatpush1.bf16.msra.mxu0 %v2936
  %3099 = vmatprep.subr.bf16.mxu0 0
  %3100 = vmatpush1.bf16.msra.mxu0 %v2937
  %3101 = vmatprep.subr.bf16.mxu0 0
  %3102 = vmatpush1.bf16.msra.mxu0 %v2938
  %3103 = vmatprep.subr.bf16.mxu0 0
  %3104 = vmatpush1.bf16.msra.mxu0 %v2939
  %3105 = vmatprep.subr.bf16.mxu0 0
  %3106 = vmatpush1.bf16.msra.mxu0 %v2940
  %3107 = vmatprep.subr.bf16.mxu0 0
  %3108 = vmatpush1.bf16.msra.mxu0 %v2941
  %3109 = vmatprep.subr.bf16.mxu0 0
  %3110 = vmatpush1.bf16.msra.mxu0 %v2942
  %3111 = vmatprep.subr.bf16.mxu0 0
  %3112 = vmatpush1.bf16.msra.mxu0 %v2943
  %3113 = vmatprep.mubr.bf16.mxu0 %v2516
  %3114 = vmatmul.mubr.bf16.gmra.mrb[0].mxu0 %v2515
  %v3115 = vpop.f32.mrb[0].mxu0
  %v3116 = vadd.f32 %v3075, %v3115
  %v3117 = vpop.f32.mrb[0].mxu0
  %v3118 = vpop.f32.mrb[0].mxu0
  %v3119 = vadd.f32 %v3078, %v3118
  %v3120 = vpop.f32.mrb[0].mxu0
  %3121 = vdwg.mxu0
  %3122 = vmatprep.subr.bf16.mxu0 0
  %3123 = vmatpush1.bf16.msra.mxu0 %v2944
  %3124 = vmatprep.subr.bf16.mxu0 0
  %3125 = vmatpush1.bf16.msra.mxu0 %v2945
  %3126 = vmatprep.subr.bf16.mxu0 0
  %3127 = vmatpush1.bf16.msra.mxu0 %v2946
  %3128 = vmatprep.subr.bf16.mxu0 0
  %3129 = vmatpush1.bf16.msra.mxu0 %v2947
  %3130 = vmatprep.subr.bf16.mxu0 0
  %3131 = vmatpush1.bf16.msra.mxu0 %v2948
  %3132 = vmatprep.subr.bf16.mxu0 0
  %3133 = vmatpush1.bf16.msra.mxu0 %v2949
  %3134 = vmatprep.subr.bf16.mxu0 0
  %3135 = vmatpush1.bf16.msra.mxu0 %v2950
  %3136 = vmatprep.subr.bf16.mxu0 0
  %3137 = vmatpush1.bf16.msra.mxu0 %v2951
  %3138 = vmatprep.subr.bf16.mxu0 0
  %3139 = vmatpush1.bf16.msra.mxu0 %v2952
  %3140 = vmatprep.subr.bf16.mxu0 0
  %3141 = vmatpush1.bf16.msra.mxu0 %v2953
  %3142 = vmatprep.subr.bf16.mxu0 0
  %3143 = vmatpush1.bf16.msra.mxu0 %v2954
  %3144 = vmatprep.subr.bf16.mxu0 0
  %3145 = vmatpush1.bf16.msra.mxu0 %v2955
  %3146 = vmatprep.subr.bf16.mxu0 0
  %3147 = vmatpush1.bf16.msra.mxu0 %v2956
  %3148 = vmatprep.subr.bf16.mxu0 0
  %3149 = vmatpush1.bf16.msra.mxu0 %v2957
  %3150 = vmatprep.subr.bf16.mxu0 0
  %3151 = vmatpush1.bf16.msra.mxu0 %v2958
  %3152 = vmatprep.subr.bf16.mxu0 0
  %3153 = vmatpush1.bf16.msra.mxu0 %v2959
  %3154 = vmatprep.mubr.bf16.mxu0 %v2518
  %3155 = vmatmul.mubr.bf16.gmra.mrb[0].mxu0 %v2517
  %v3156 = vpop.f32.mrb[0].mxu0
  %v3157 = vadd.f32 %v3116, %v3156
  %v3158 = vpop.f32.mrb[0].mxu0
  %v3159 = vpop.f32.mrb[0].mxu0
  %v3160 = vadd.f32 %v3119, %v3159
  %v3161 = vpop.f32.mrb[0].mxu0
  %3162 = vdwg.mxu0
  %3163 = vmatprep.subr.bf16.mxu0 0
  %3164 = vmatpush1.bf16.msra.mxu0 %v2960
  %3165 = vmatprep.subr.bf16.mxu0 0
  %3166 = vmatpush1.bf16.msra.mxu0 %v2961
  %3167 = vmatprep.subr.bf16.mxu0 0
  %3168 = vmatpush1.bf16.msra.mxu0 %v2962
  %3169 = vmatprep.subr.bf16.mxu0 0
  %3170 = vmatpush1.bf16.msra.mxu0 %v2963
  %3171 = vmatprep.subr.bf16.mxu0 0
  %3172 = vmatpush1.bf16.msra.mxu0 %v2964
  %3173 = vmatprep.subr.bf16.mxu0 0
  %3174 = vmatpush1.bf16.msra.mxu0 %v2965
  %3175 = vmatprep.subr.bf16.mxu0 0
  %3176 = vmatpush1.bf16.msra.mxu0 %v2966
  %3177 = vmatprep.subr.bf16.mxu0 0
  %3178 = vmatpush1.bf16.msra.mxu0 %v2967
  %3179 = vmatprep.subr.bf16.mxu0 0
  %3180 = vmatpush1.bf16.msra.mxu0 %v2968
  %3181 = vmatprep.subr.bf16.mxu0 0
  %3182 = vmatpush1.bf16.msra.mxu0 %v2969
  %3183 = vmatprep.subr.bf16.mxu0 0
  %3184 = vmatpush1.bf16.msra.mxu0 %v2970
  %3185 = vmatprep.subr.bf16.mxu0 0
  %3186 = vmatpush1.bf16.msra.mxu0 %v2971
  %3187 = vmatprep.subr.bf16.mxu0 0
  %3188 = vmatpush1.bf16.msra.mxu0 %v2972
  %3189 = vmatprep.subr.bf16.mxu0 0
  %3190 = vmatpush1.bf16.msra.mxu0 %v2973
  %3191 = vmatprep.subr.bf16.mxu0 0
  %3192 = vmatpush1.bf16.msra.mxu0 %v2974
  %3193 = vmatprep.subr.bf16.mxu0 0
  %3194 = vmatpush1.bf16.msra.mxu0 %v2975
  %3195 = vmatprep.mubr.bf16.mxu0 %v2520
  %3196 = vmatmul.mubr.bf16.gmra.mrb[0].mxu0 %v2519
  %v3197 = vpop.f32.mrb[0].mxu0
  %v3198 = vadd.f32 %v3157, %v3197
  %v3199 = vpop.f32.mrb[0].mxu0
  %v3200 = vpop.f32.mrb[0].mxu0
  %v3201 = vadd.f32 %v3160, %v3200
  %v3202 = vpop.f32.mrb[0].mxu0
  %3203 = vdwg.mxu0
  %3204 = vst [vmem:[%s7] sm:$0xff] %v3198
  %3205 = vst [vmem:[%s7 + $0x8] sm:$0xff] %v3201
  // Predicated region
  $region30: #{_fused_mlp_call.1} parent=0 // pred_check
    _
  $region31: #{_fused_mlp_call.1} parent=0 // pred_check_branch
    %3207 = sbr.rel (0) target = $region33
  $region32: #{_fused_mlp_call.1} parent=0 // pred_region
    _
  $region33: #{_fused_mlp_call.1} parent=0 // pred_fallthru
    _
  // Predicated region
  $region34: #{_fused_mlp_call.1} parent=0 // pred_check
    _
  $region35: #{_fused_mlp_call.1} parent=0 // pred_check_branch
    %3209 = sbr.rel (0) target = $region37
  $region36: #{_fused_mlp_call.1} parent=0 // pred_region
    _
  $region37: #{_fused_mlp_call.1} parent=0 // pred_fallthru
    _

</llo_original>
